<compile_context>
chip_gen: v7x
topology: tpu7x:2x2x1
jax: 0.10.0
libtpu: 0.0.40
codegen_flags: <defaults>
</compile_context>

<pallas_src>
import jax
import jax.numpy as jnp
from jax.experimental import pallas as pl
from jax.experimental.pallas import tpu as pltpu


# ---------------------------------------------------------------------------
# Kernel
# ---------------------------------------------------------------------------
def _mlp_kernel(x_ref, *refs):
    """Fused MLP: N x (dot + bias [+ ReLU]).  refs = (w1,b1,...,wN,bN,o_ref)."""
    o_ref = refs[-1]
    wb_refs = refs[:-1]
    n_layers = len(wb_refs) // 2

    compute_dtype = wb_refs[0].dtype      # bf16 (or f32) MXU operand dtype
    h = x_ref[...].astype(compute_dtype)  # f32 -> bf16 cast on the VPU, in-kernel
    for l in range(n_layers):
        w = wb_refs[2 * l]
        b = wb_refs[2 * l + 1]
        # MXU matmul with f32 accumulation; bias-add / ReLU stay in f32 (VPU).
        h = jnp.dot(h, w[...], preferred_element_type=jnp.float32) + b[...]
        if l < n_layers - 1:
            h = jnp.maximum(h, 0.0).astype(compute_dtype)
    o_ref[...] = h.astype(o_ref.dtype)


# ---------------------------------------------------------------------------
# Wrapper
# ---------------------------------------------------------------------------
def _round_up(x, m):
    return ((x + m - 1) // m) * m


def _choose_tiling(batch, batch_tile, min_grid_steps=1):
    """Pick (padded_batch, row_tile, n_steps).

    Row tiles are multiples of 16 (native bf16 sublane packing).  A single
    grid step is used whenever the batch fits in one tile (single-TC chips);
    `min_grid_steps=2` can be used on v7x to split evenly across both TCs.
    Batch padding is minimal (at most 15 rows per step).
    """
    tile_target = max(_round_up(min(batch_tile, batch), 16), 16)
    n_steps = max(-(-batch // tile_target), min_grid_steps)
    tb = max(_round_up(-(-batch // n_steps), 16), 16)
    b_pad = tb * n_steps
    return b_pad, tb, n_steps


def prepare_autoencoder_params(params, compute_dtype=jnp.bfloat16):
    """params: 6 (W_t, b) f32 pairs, W_t is (in, out), PyTorch layer order.

    Returns ([(W(compute_dtype), b(1,out) f32)] * 5, out_dim): layers 3 & 4
    fused.  Intermediate output dims are zero-padded to multiples of 128
    lanes; the first layer's input dim and the last layer's output dim are
    kept at their true widths (so x and the output are passed unpadded and
    lane-dense via full-extent last-dim blocks).  Zero padding is exact.
    """
    (w1, b1), (w2, b2), (w3, b3), (w4, b4), (w5, b5), (w6, b6) = params

    # Fuse encoder-final and decoder-first Linears (no activation in between).
    w34 = w3 @ w4                 # (h1, h1)
    b34 = b3 @ w4 + b4            # (h1,)
    layers = [(w1, b1), (w2, b2), (w34, b34), (w5, b5), (w6, b6)]

    prepped = []
    n = len(layers)
    in_cur = layers[0][0].shape[0]          # true input dim, unpadded
    for l, (w, b) in enumerate(layers):
        d_in, d_out = w.shape
        d_out_p = d_out if l == n - 1 else _round_up(d_out, 128)
        w_p = jnp.zeros((in_cur, d_out_p), jnp.float32).at[:d_in, :d_out].set(w)
        b_p = jnp.zeros((d_out_p,), jnp.float32).at[:d_out].set(b)
        prepped.append((w_p.astype(compute_dtype),
                        b_p.reshape(1, -1)))   # bias stays f32
        in_cur = d_out_p
    out_dim = w6.shape[1]
    return prepped, out_dim


def autoencoder_forward(x, prepped_params, out_dim, *,
                        batch_tile=1024, min_grid_steps=1):
    """x: (B, input_dim) float32.  prepped_params from prepare_autoencoder_params.

    min_grid_steps: set to 2 on v7x (2 TensorCores) when batch >= ~256 so both
    cores get equal work; leave at 1 on v5e/v6e (single-TC) where extra grid
    steps are pure pipeline overhead.
    """
    batch, in_dim = x.shape
    assert in_dim == prepped_params[0][0].shape[0]

    b_pad, tb, n_steps = _choose_tiling(batch, batch_tile, min_grid_steps)

    # Minimal row-only padding (no lane padding, no dtype cast in the wrapper).
    x_in = x if b_pad == batch else jnp.pad(x, ((0, b_pad - batch), (0, 0)))

    # BlockSpecs: batch-tiled input/output; all (small) weights fully resident.
    in_specs = [pl.BlockSpec((tb, in_dim), lambda i: (i, 0))]
    flat_args = []
    for w, b in prepped_params:
        flat_args.append(w)
        flat_args.append(b)
        in_specs.append(pl.BlockSpec(w.shape, lambda i: (0, 0)))
        in_specs.append(pl.BlockSpec(b.shape, lambda i: (0, 0)))

    out = pl.pallas_call(
        _mlp_kernel,
        out_shape=jax.ShapeDtypeStruct((b_pad, out_dim), x.dtype),
        grid_spec=pltpu.PrefetchScalarGridSpec(
            num_scalar_prefetch=0,
            grid=(n_steps,),
            in_specs=in_specs,
            out_specs=pl.BlockSpec((tb, out_dim), lambda i: (i, 0)),
        ),
        compiler_params=pltpu.CompilerParams(
            dimension_semantics=("parallel",)),
    )(x_in, *flat_args)

    return out if b_pad == batch else out[:batch]


# ---------------------------------------------------------------------------
# Parameter construction (PyTorch-style init) + references
# ---------------------------------------------------------------------------
def init_linear(key, in_dim, out_dim):
    """PyTorch-style Linear init; returns W transposed to (in, out) and b."""
    kw, kb = jax.random.split(key)
    bound = 1.0 / jnp.sqrt(in_dim)
    w = jax.random.uniform(kw, (out_dim, in_dim), jnp.float32, -bound, bound)
    b = jax.random.uniform(kb, (out_dim,), jnp.float32, -bound, bound)
    return w.T, b  # (in, out), (out,)


def build_autoencoder_params(key, input_dim, emb_dim, hidden_dims=(256, 128)):
    keys = jax.random.split(key, 6)
    h0, h1 = hidden_dims
    # encoder: input_dim -> h0 -> h1 -> emb_dim
    p1 = init_linear(keys[0], input_dim, h0)
    p2 = init_linear(keys[1], h0, h1)
    p3 = init_linear(keys[2], h1, emb_dim)
    # decoder: emb_dim -> h1 -> h0 -> input_dim (reversed hidden dims)
    p4 = init_linear(keys[3], emb_dim, h1)
    p5 = init_linear(keys[4], h1, h0)
    p6 = init_linear(keys[5], h0, input_dim)
    return [p1, p2, p3, p4, p5, p6]


def reference_forward_f32(x, params):
    """Original-module semantics, pure f32, unfused (6 Linears)."""
    has_act = [True, True, False, True, True, False]
    h = x
    for (w, b), act in zip(params, has_act):
        h = h @ w + b
        if act:
            h = jnp.maximum(h, 0.0)
    return h


def reference_forward_prepped(x, prepped_params):
    """Mirrors the kernel's numeric path (fusion + bf16-rounded operands)."""
    cdt = prepped_params[0][0].dtype
    h = x.astype(cdt).astype(jnp.float32)
    n = len(prepped_params)
    for l, (w, b) in enumerate(prepped_params):
        h = h @ w.astype(jnp.float32) + b
        if l < n - 1:
            h = jnp.maximum(h, 0.0).astype(cdt).astype(jnp.float32)
    return h


# ---------------------------------------------------------------------------
# Demo / self-test
# ---------------------------------------------------------------------------
if __name__ == "__main__":
    input_dim = 64
    emb_dim = 32
    batch = 256

    key = jax.random.PRNGKey(0)
    kx, kp = jax.random.split(key)

    x = jax.random.normal(kx, (batch, input_dim), jnp.float32)
    params = build_autoencoder_params(kp, input_dim, emb_dim, hidden_dims=(256, 128))

    prepped, out_dim = prepare_autoencoder_params(params, compute_dtype=jnp.bfloat16)

    # Main run: single grid step (batch fits in one tile on a single-TC chip).
    out = autoencoder_forward(x, prepped, out_dim, batch_tile=1024)
    out = jax.block_until_ready(out)
    assert out.shape == (batch, input_dim)

    # Tight check vs a reference that mirrors the kernel's exact numeric path.
    ref_exact = reference_forward_prepped(x, prepped)
    assert jnp.allclose(out, ref_exact, atol=1e-3, rtol=1e-3), \
        "mismatch vs bf16-path reference"

    # Loose check vs the original (unfused, f32) module semantics:
    # only bf16 operand rounding separates the two.
    ref_f32 = reference_forward_f32(x, params)
    assert jnp.allclose(out, ref_f32, atol=5e-2, rtol=5e-2), \
        "mismatch vs f32 module reference"

    # Secondary run: odd batch (exercises minimal row padding) and a 2-step
    # grid (the v7x-style even split / multi-step path).
    x2 = jax.random.normal(jax.random.PRNGKey(1), (100, input_dim), jnp.float32)
    out2 = autoencoder_forward(x2, prepped, out_dim, batch_tile=64,
                               min_grid_steps=2)
    out2 = jax.block_until_ready(out2)
    assert out2.shape == (100, input_dim)
    assert jnp.allclose(out2, reference_forward_prepped(x2, prepped),
                        atol=1e-3, rtol=1e-3), "mismatch on padded/multi-step path"

    print("KERNEL_OK")
</pallas_src>

<mosaic_0001>
module attributes {stable_mosaic.version = 11 : i64} {
  func.func @_mlp_kernel(%arg0: i32, %arg1: memref<256x64xf32, #tpu.memory_space<vmem>>, %arg2: memref<64x256xbf16, #tpu.memory_space<vmem>>, %arg3: memref<1x256xf32, #tpu.memory_space<vmem>>, %arg4: memref<256x128xbf16, #tpu.memory_space<vmem>>, %arg5: memref<1x128xf32, #tpu.memory_space<vmem>>, %arg6: memref<128x128xbf16, #tpu.memory_space<vmem>>, %arg7: memref<1x128xf32, #tpu.memory_space<vmem>>, %arg8: memref<128x256xbf16, #tpu.memory_space<vmem>>, %arg9: memref<1x256xf32, #tpu.memory_space<vmem>>, %arg10: memref<256x64xbf16, #tpu.memory_space<vmem>>, %arg11: memref<1x64xf32, #tpu.memory_space<vmem>>, %arg12: memref<256x64xf32, #tpu.memory_space<vmem>>) attributes {dimension_semantics = [#tpu.dimension_semantics<parallel>], iteration_bounds = array<i64: 1>, scalar_prefetch = 0 : i64, scratch_operands = 0 : i64, tpu.core_type = #tpu.core_type<tc>, window_params = [{transform_indices = @transform_0, window_bounds = array<i64: 256, 64>}, {pipeline_mode = #tpu.pipeline_mode<synchronous>, transform_indices = @transform_1, window_bounds = array<i64: 64, 256>}, {pipeline_mode = #tpu.pipeline_mode<synchronous>, transform_indices = @transform_2, window_bounds = array<i64: 1, 256>}, {pipeline_mode = #tpu.pipeline_mode<synchronous>, transform_indices = @transform_3, window_bounds = array<i64: 256, 128>}, {pipeline_mode = #tpu.pipeline_mode<synchronous>, transform_indices = @transform_4, window_bounds = array<i64: 1, 128>}, {pipeline_mode = #tpu.pipeline_mode<synchronous>, transform_indices = @transform_5, window_bounds = array<i64: 128, 128>}, {pipeline_mode = #tpu.pipeline_mode<synchronous>, transform_indices = @transform_6, window_bounds = array<i64: 1, 128>}, {pipeline_mode = #tpu.pipeline_mode<synchronous>, transform_indices = @transform_7, window_bounds = array<i64: 128, 256>}, {pipeline_mode = #tpu.pipeline_mode<synchronous>, transform_indices = @transform_8, window_bounds = array<i64: 1, 256>}, {pipeline_mode = #tpu.pipeline_mode<synchronous>, transform_indices = @transform_9, window_bounds = array<i64: 256, 64>}, {pipeline_mode = #tpu.pipeline_mode<synchronous>, transform_indices = @transform_10, window_bounds = array<i64: 1, 64>}, {transform_indices = @transform_11, window_bounds = array<i64: 256, 64>}]} {
    %c0 = arith.constant 0 : index
    %c0_0 = arith.constant 0 : index
    %0 = vector.load %arg1[%c0, %c0_0] : memref<256x64xf32, #tpu.memory_space<vmem>>, vector<256x64xf32>
    %1 = arith.truncf %0 : vector<256x64xf32> to vector<256x64xbf16>
    %c0_1 = arith.constant 0 : index
    %c0_2 = arith.constant 0 : index
    %2 = vector.load %arg2[%c0_1, %c0_2] : memref<64x256xbf16, #tpu.memory_space<vmem>>, vector<64x256xbf16>
    %cst = arith.constant dense<0.000000e+00> : vector<256x256xf32>
    %3 = tpu.matmul %1, %2, %cst {dimension_numbers = #tpu.dot_dimension_numbers<[1], [0], [0], [1], [0, 0, 1, 1], [], []>} : vector<256x64xbf16>, vector<64x256xbf16>, vector<256x256xf32> -> vector<256x256xf32>
    %c0_3 = arith.constant 0 : index
    %c0_4 = arith.constant 0 : index
    %4 = vector.load %arg3[%c0_3, %c0_4] : memref<1x256xf32, #tpu.memory_space<vmem>>, vector<1x256xf32>
    %5 = vector.broadcast %4 : vector<1x256xf32> to vector<256x256xf32>
    %6 = arith.addf %3, %5 : vector<256x256xf32>
    %cst_5 = arith.constant 0.000000e+00 : f32
    %7 = vector.broadcast %cst_5 : f32 to vector<256x256xf32>
    %8 = arith.maximumf %6, %7 : vector<256x256xf32>
    %9 = arith.truncf %8 : vector<256x256xf32> to vector<256x256xbf16>
    %c0_6 = arith.constant 0 : index
    %c0_7 = arith.constant 0 : index
    %10 = vector.load %arg4[%c0_6, %c0_7] : memref<256x128xbf16, #tpu.memory_space<vmem>>, vector<256x128xbf16>
    %cst_8 = arith.constant dense<0.000000e+00> : vector<256x128xf32>
    %11 = tpu.matmul %9, %10, %cst_8 {dimension_numbers = #tpu.dot_dimension_numbers<[1], [0], [0], [1], [0, 0, 1, 1], [], []>} : vector<256x256xbf16>, vector<256x128xbf16>, vector<256x128xf32> -> vector<256x128xf32>
    %c0_9 = arith.constant 0 : index
    %c0_10 = arith.constant 0 : index
    %12 = vector.load %arg5[%c0_9, %c0_10] : memref<1x128xf32, #tpu.memory_space<vmem>>, vector<1x128xf32>
    %13 = vector.broadcast %12 : vector<1x128xf32> to vector<256x128xf32>
    %14 = arith.addf %11, %13 : vector<256x128xf32>
    %cst_11 = arith.constant 0.000000e+00 : f32
    %15 = vector.broadcast %cst_11 : f32 to vector<256x128xf32>
    %16 = arith.maximumf %14, %15 : vector<256x128xf32>
    %17 = arith.truncf %16 : vector<256x128xf32> to vector<256x128xbf16>
    %c0_12 = arith.constant 0 : index
    %c0_13 = arith.constant 0 : index
    %18 = vector.load %arg6[%c0_12, %c0_13] : memref<128x128xbf16, #tpu.memory_space<vmem>>, vector<128x128xbf16>
    %cst_14 = arith.constant dense<0.000000e+00> : vector<256x128xf32>
    %19 = tpu.matmul %17, %18, %cst_14 {dimension_numbers = #tpu.dot_dimension_numbers<[1], [0], [0], [1], [0, 0, 1, 1], [], []>} : vector<256x128xbf16>, vector<128x128xbf16>, vector<256x128xf32> -> vector<256x128xf32>
    %c0_15 = arith.constant 0 : index
    %c0_16 = arith.constant 0 : index
    %20 = vector.load %arg7[%c0_15, %c0_16] : memref<1x128xf32, #tpu.memory_space<vmem>>, vector<1x128xf32>
    %21 = vector.broadcast %20 : vector<1x128xf32> to vector<256x128xf32>
    %22 = arith.addf %19, %21 : vector<256x128xf32>
    %cst_17 = arith.constant 0.000000e+00 : f32
    %23 = vector.broadcast %cst_17 : f32 to vector<256x128xf32>
    %24 = arith.maximumf %22, %23 : vector<256x128xf32>
    %25 = arith.truncf %24 : vector<256x128xf32> to vector<256x128xbf16>
    %c0_18 = arith.constant 0 : index
    %c0_19 = arith.constant 0 : index
    %26 = vector.load %arg8[%c0_18, %c0_19] : memref<128x256xbf16, #tpu.memory_space<vmem>>, vector<128x256xbf16>
    %cst_20 = arith.constant dense<0.000000e+00> : vector<256x256xf32>
    %27 = tpu.matmul %25, %26, %cst_20 {dimension_numbers = #tpu.dot_dimension_numbers<[1], [0], [0], [1], [0, 0, 1, 1], [], []>} : vector<256x128xbf16>, vector<128x256xbf16>, vector<256x256xf32> -> vector<256x256xf32>
    %c0_21 = arith.constant 0 : index
    %c0_22 = arith.constant 0 : index
    %28 = vector.load %arg9[%c0_21, %c0_22] : memref<1x256xf32, #tpu.memory_space<vmem>>, vector<1x256xf32>
    %29 = vector.broadcast %28 : vector<1x256xf32> to vector<256x256xf32>
    %30 = arith.addf %27, %29 : vector<256x256xf32>
    %cst_23 = arith.constant 0.000000e+00 : f32
    %31 = vector.broadcast %cst_23 : f32 to vector<256x256xf32>
    %32 = arith.maximumf %30, %31 : vector<256x256xf32>
    %33 = arith.truncf %32 : vector<256x256xf32> to vector<256x256xbf16>
    %c0_24 = arith.constant 0 : index
    %c0_25 = arith.constant 0 : index
    %34 = vector.load %arg10[%c0_24, %c0_25] : memref<256x64xbf16, #tpu.memory_space<vmem>>, vector<256x64xbf16>
    %cst_26 = arith.constant dense<0.000000e+00> : vector<256x64xf32>
    %35 = tpu.matmul %33, %34, %cst_26 {dimension_numbers = #tpu.dot_dimension_numbers<[1], [0], [0], [1], [0, 0, 1, 1], [], []>} : vector<256x256xbf16>, vector<256x64xbf16>, vector<256x64xf32> -> vector<256x64xf32>
    %c0_27 = arith.constant 0 : index
    %c0_28 = arith.constant 0 : index
    %36 = vector.load %arg11[%c0_27, %c0_28] : memref<1x64xf32, #tpu.memory_space<vmem>>, vector<1x64xf32>
    %37 = vector.broadcast %36 : vector<1x64xf32> to vector<256x64xf32>
    %38 = arith.addf %35, %37 : vector<256x64xf32>
    %c0_29 = arith.constant 0 : index
    %c0_30 = arith.constant 0 : index
    %39 = vector.load %arg12[%c0_29, %c0_30] : memref<256x64xf32, #tpu.memory_space<vmem>>, vector<256x64xf32>
    tpu.vector_store %arg12[%c0_29, %c0_30], %38 {strides = array<i32>} : memref<256x64xf32, #tpu.memory_space<vmem>>, vector<256x64xf32>,
    return
  }
  func.func @transform_0(%arg0: i32) -> (i32, i32) {
    %c0_i32 = arith.constant 0 : i32
    %c0_i32_0 = arith.constant 0 : i32
    return %arg0, %c0_i32 : i32, i32
  }
  func.func @transform_1(%arg0: i32) -> (i32, i32) {
    %c0_i32 = arith.constant 0 : i32
    %c0_i32_0 = arith.constant 0 : i32
    %c0_i32_1 = arith.constant 0 : i32
    return %c0_i32, %c0_i32_0 : i32, i32
  }
  func.func @transform_2(%arg0: i32) -> (i32, i32) {
    %c0_i32 = arith.constant 0 : i32
    %c0_i32_0 = arith.constant 0 : i32
    %c0_i32_1 = arith.constant 0 : i32
    return %c0_i32, %c0_i32_0 : i32, i32
  }
  func.func @transform_3(%arg0: i32) -> (i32, i32) {
    %c0_i32 = arith.constant 0 : i32
    %c0_i32_0 = arith.constant 0 : i32
    %c0_i32_1 = arith.constant 0 : i32
    return %c0_i32, %c0_i32_0 : i32, i32
  }
  func.func @transform_4(%arg0: i32) -> (i32, i32) {
    %c0_i32 = arith.constant 0 : i32
    %c0_i32_0 = arith.constant 0 : i32
    %c0_i32_1 = arith.constant 0 : i32
    return %c0_i32, %c0_i32_0 : i32, i32
  }
  func.func @transform_5(%arg0: i32) -> (i32, i32) {
    %c0_i32 = arith.constant 0 : i32
    %c0_i32_0 = arith.constant 0 : i32
    %c0_i32_1 = arith.constant 0 : i32
    return %c0_i32, %c0_i32_0 : i32, i32
  }
  func.func @transform_6(%arg0: i32) -> (i32, i32) {
    %c0_i32 = arith.constant 0 : i32
    %c0_i32_0 = arith.constant 0 : i32
    %c0_i32_1 = arith.constant 0 : i32
    return %c0_i32, %c0_i32_0 : i32, i32
  }
  func.func @transform_7(%arg0: i32) -> (i32, i32) {
    %c0_i32 = arith.constant 0 : i32
    %c0_i32_0 = arith.constant 0 : i32
    %c0_i32_1 = arith.constant 0 : i32
    return %c0_i32, %c0_i32_0 : i32, i32
  }
  func.func @transform_8(%arg0: i32) -> (i32, i32) {
    %c0_i32 = arith.constant 0 : i32
    %c0_i32_0 = arith.constant 0 : i32
    %c0_i32_1 = arith.constant 0 : i32
    return %c0_i32, %c0_i32_0 : i32, i32
  }
  func.func @transform_9(%arg0: i32) -> (i32, i32) {
    %c0_i32 = arith.constant 0 : i32
    %c0_i32_0 = arith.constant 0 : i32
    %c0_i32_1 = arith.constant 0 : i32
    return %c0_i32, %c0_i32_0 : i32, i32
  }
  func.func @transform_10(%arg0: i32) -> (i32, i32) {
    %c0_i32 = arith.constant 0 : i32
    %c0_i32_0 = arith.constant 0 : i32
    %c0_i32_1 = arith.constant 0 : i32
    return %c0_i32, %c0_i32_0 : i32, i32
  }
  func.func @transform_11(%arg0: i32) -> (i32, i32) {
    %c0_i32 = arith.constant 0 : i32
    %c0_i32_0 = arith.constant 0 : i32
    return %arg0, %c0_i32 : i32, i32
  }
}

</mosaic_0001>

<llo_original>
// kernel: tpu_custom_call.1
$region0: #{tpu_custom_call.1}
  #allocation0 [shape = 'u32[]', space=smem, size = 0x4, offset = 0x4, fixed_abs, tag = 'smem constant byte address 0x4 - core index']
  #allocation1 [shape = 'u32[144,128]{1,0:T(1,128)}', space=vmem, size = 0x12000, scoped, tag = 'internal scratch']
  %s0 = inlined_call_operand.vmem [shape: f32[256,64], index: 0, kind: input, shape index: {}]
  %s1 = inlined_call_operand.vmem [shape: bf16[64,256], index: 1, kind: input, shape index: {}]
  %s2 = inlined_call_operand.vmem [shape: f32[1,256], index: 2, kind: input, shape index: {}]
  %s3 = inlined_call_operand.vmem [shape: bf16[256,128], index: 3, kind: input, shape index: {}]
  %s4 = inlined_call_operand.vmem [shape: f32[1,128], index: 4, kind: input, shape index: {}]
  %s5 = inlined_call_operand.vmem [shape: bf16[128,128], index: 5, kind: input, shape index: {}]
  %s6 = inlined_call_operand.vmem [shape: f32[1,128], index: 6, kind: input, shape index: {}]
  %s7 = inlined_call_operand.vmem [shape: bf16[128,256], index: 7, kind: input, shape index: {}]
  %s8 = inlined_call_operand.vmem [shape: f32[1,256], index: 8, kind: input, shape index: {}]
  %s9 = inlined_call_operand.vmem [shape: bf16[256,64], index: 9, kind: input, shape index: {}]
  %s10 = inlined_call_operand.vmem [shape: f32[1,64], index: 10, kind: input, shape index: {}]
  %s11 = inlined_call_operand.vmem [shape: f32[256,64], index: 11, kind: output, shape index: {}]
  %s12 = sld [smem:[#allocation0]]
  $region54: #{tpu_custom_call.1} parent=0
    _
  %s14 = ssub.s32 1, %s12
  %s15 = scalar_select 0, %s14, %s12
  // Predicated region
  $region2: #{tpu_custom_call.1} parent=0 // pred_check
    _
  $region3: #{tpu_custom_call.1} parent=0 // pred_check_branch
    %17 = sbr.rel (0) target = $region5
  $region4: #{tpu_custom_call.1} parent=0 // pred_region
    _
  $region5: #{tpu_custom_call.1} parent=0 // pred_fallthru
    _
  // Predicated region
  $region6: #{tpu_custom_call.1} parent=0 // pred_check
    _
  $region7: #{tpu_custom_call.1} parent=0 // pred_check_branch
    %19 = sbr.rel (0) target = $region9
  $region8: #{tpu_custom_call.1} parent=0 // pred_region
    _
  $region9: #{tpu_custom_call.1} parent=0 // pred_fallthru
    _
  // Predicated region
  $region10: #{tpu_custom_call.1} parent=0 // pred_check
    _
  $region11: #{tpu_custom_call.1} parent=0 // pred_check_branch
    %21 = sbr.rel (0) target = $region13
  $region12: #{tpu_custom_call.1} parent=0 // pred_region
    _
  $region13: #{tpu_custom_call.1} parent=0 // pred_fallthru
    _
  // Predicated region
  $region14: #{tpu_custom_call.1} parent=0 // pred_check
    _
  $region15: #{tpu_custom_call.1} parent=0 // pred_check_branch
    %23 = sbr.rel (0) target = $region17
  $region16: #{tpu_custom_call.1} parent=0 // pred_region
    _
  $region17: #{tpu_custom_call.1} parent=0 // pred_fallthru
    _
  // Predicated region
  $region18: #{tpu_custom_call.1} parent=0 // pred_check
    _
  $region19: #{tpu_custom_call.1} parent=0 // pred_check_branch
    %25 = sbr.rel (0) target = $region21
  $region20: #{tpu_custom_call.1} parent=0 // pred_region
    _
  $region21: #{tpu_custom_call.1} parent=0 // pred_fallthru
    _
  // Predicated region
  $region22: #{tpu_custom_call.1} parent=0 // pred_check
    _
  $region23: #{tpu_custom_call.1} parent=0 // pred_check_branch
    %27 = sbr.rel (0) target = $region25
  $region24: #{tpu_custom_call.1} parent=0 // pred_region
    _
  $region25: #{tpu_custom_call.1} parent=0 // pred_fallthru
    _
  // Predicated region
  $region26: #{tpu_custom_call.1} parent=0 // pred_check
    _
  $region27: #{tpu_custom_call.1} parent=0 // pred_check_branch
    %29 = sbr.rel (0) target = $region29
  $region28: #{tpu_custom_call.1} parent=0 // pred_region
    _
  $region29: #{tpu_custom_call.1} parent=0 // pred_fallthru
    _
  // Predicated region
  $region30: #{tpu_custom_call.1} parent=0 // pred_check
    _
  $region31: #{tpu_custom_call.1} parent=0 // pred_check_branch
    %31 = sbr.rel (0) target = $region33
  $region32: #{tpu_custom_call.1} parent=0 // pred_region
    _
  $region33: #{tpu_custom_call.1} parent=0 // pred_fallthru
    _
  // Predicated region
  $region34: #{tpu_custom_call.1} parent=0 // pred_check
    _
  $region35: #{tpu_custom_call.1} parent=0 // pred_check_branch
    %33 = sbr.rel (0) target = $region37
  $region36: #{tpu_custom_call.1} parent=0 // pred_region
    _
  $region37: #{tpu_custom_call.1} parent=0 // pred_fallthru
    _
  // Predicated region
  $region38: #{tpu_custom_call.1} parent=0 // pred_check
    _
  $region39: #{tpu_custom_call.1} parent=0 // pred_check_branch
    %35 = sbr.rel (0) target = $region41
  $region40: #{tpu_custom_call.1} parent=0 // pred_region
    _
  $region41: #{tpu_custom_call.1} parent=0 // pred_fallthru
    _
  // Predicated region
  $region42: #{tpu_custom_call.1} parent=0 // pred_check
    _
  $region43: #{tpu_custom_call.1} parent=0 // pred_check_branch
    %37 = sbr.rel (0) target = $region45
  $region44: #{tpu_custom_call.1} parent=0 // pred_region
    _
  $region45: #{tpu_custom_call.1} parent=0 // pred_fallthru
    _
  %v39 = vld [vmem:[%s0] sm:$0xff]
  %v40 = vld [vmem:[%s0 + $0x8] sm:$0xff]
  %v41 = vld [vmem:[%s0 + $0x10] sm:$0xff]
  %v42 = vld [vmem:[%s0 + $0x18] sm:$0xff]
  %v43 = vld [vmem:[%s0 + $0x20] sm:$0xff]
  %v44 = vld [vmem:[%s0 + $0x28] sm:$0xff]
  %v45 = vld [vmem:[%s0 + $0x30] sm:$0xff]
  %v46 = vld [vmem:[%s0 + $0x38] sm:$0xff]
  %v47 = vld [vmem:[%s0 + $0x40] sm:$0xff]
  %v48 = vld [vmem:[%s0 + $0x48] sm:$0xff]
  %v49 = vld [vmem:[%s0 + $0x50] sm:$0xff]
  %v50 = vld [vmem:[%s0 + $0x58] sm:$0xff]
  %v51 = vld [vmem:[%s0 + $0x60] sm:$0xff]
  %v52 = vld [vmem:[%s0 + $0x68] sm:$0xff]
  %v53 = vld [vmem:[%s0 + $0x70] sm:$0xff]
  %v54 = vld [vmem:[%s0 + $0x78] sm:$0xff]
  %v55 = vld [vmem:[%s0 + $0x80] sm:$0xff]
  %v56 = vld [vmem:[%s0 + $0x88] sm:$0xff]
  %v57 = vld [vmem:[%s0 + $0x90] sm:$0xff]
  %v58 = vld [vmem:[%s0 + $0x98] sm:$0xff]
  %v59 = vld [vmem:[%s0 + $0xa0] sm:$0xff]
  %v60 = vld [vmem:[%s0 + $0xa8] sm:$0xff]
  %v61 = vld [vmem:[%s0 + $0xb0] sm:$0xff]
  %v62 = vld [vmem:[%s0 + $0xb8] sm:$0xff]
  %v63 = vld [vmem:[%s0 + $0xc0] sm:$0xff]
  %v64 = vld [vmem:[%s0 + $0xc8] sm:$0xff]
  %v65 = vld [vmem:[%s0 + $0xd0] sm:$0xff]
  %v66 = vld [vmem:[%s0 + $0xd8] sm:$0xff]
  %v67 = vld [vmem:[%s0 + $0xe0] sm:$0xff]
  %v68 = vld [vmem:[%s0 + $0xe8] sm:$0xff]
  %v69 = vld [vmem:[%s0 + $0xf0] sm:$0xff]
  %v70 = vld [vmem:[%s0 + $0xf8] sm:$0xff]
  %v71 = vpack.c.bf16 %v40, %v39
  %v72 = vpack.c.bf16 %v42, %v41
  %v73 = vpack.c.bf16 %v44, %v43
  %v74 = vpack.c.bf16 %v46, %v45
  %v75 = vpack.c.bf16 %v48, %v47
  %v76 = vpack.c.bf16 %v50, %v49
  %v77 = vpack.c.bf16 %v52, %v51
  %v78 = vpack.c.bf16 %v54, %v53
  %v79 = vpack.c.bf16 %v56, %v55
  %v80 = vpack.c.bf16 %v58, %v57
  %v81 = vpack.c.bf16 %v60, %v59
  %v82 = vpack.c.bf16 %v62, %v61
  %v83 = vpack.c.bf16 %v64, %v63
  %v84 = vpack.c.bf16 %v66, %v65
  %v85 = vpack.c.bf16 %v68, %v67
  %v86 = vpack.c.bf16 %v70, %v69
  %v87 = vld [vmem:[%s1] sm:$0xff]
  %v88 = vld [vmem:[%s1 + $0x8] sm:$0xff]
  %v89 = vld [vmem:[%s1 + $0x10] sm:$0xff]
  %v90 = vld [vmem:[%s1 + $0x18] sm:$0xff]
  %v91 = vld [vmem:[%s1 + $0x20] sm:$0xff]
  %v92 = vld [vmem:[%s1 + $0x28] sm:$0xff]
  %v93 = vld [vmem:[%s1 + $0x30] sm:$0xff]
  %v94 = vld [vmem:[%s1 + $0x38] sm:$0xff]
  %v95 = vld [vmem:[%s2] sm:$0x3]
  %v97 = vlaneseq
  %v98 = vshrl.u32 %v97, 7
  %v99 = vsub.s32 0, %v98
  %v100 = vrot.slane %v95, %v99
  %v101 = vlaneseq
  %v102 = vshrl.u32 %v101, 7
  %v103 = vsub.s32 1, %v102
  %v104 = vrot.slane %v95, %v103
  %v115 = vunpack.c.l.b16 %v87
  %v116 = vunpack.c.h.b16 %v87
  %v117 = vunpack.c.l.b16 %v88
  %v118 = vunpack.c.h.b16 %v88
  %v119 = vunpack.c.l.b16 %v89
  %v120 = vunpack.c.h.b16 %v89
  %v121 = vunpack.c.l.b16 %v90
  %v122 = vunpack.c.h.b16 %v90
  %v123 = vunpack.c.l.b16 %v91
  %v124 = vunpack.c.h.b16 %v91
  %v125 = vunpack.c.l.b16 %v92
  %v126 = vunpack.c.h.b16 %v92
  %v127 = vunpack.c.l.b16 %v93
  %v128 = vunpack.c.h.b16 %v93
  %v129 = vunpack.c.l.b16 %v94
  %v130 = vunpack.c.h.b16 %v94
  %v131 = vpack.c.b16 %v117, %v115
  %v132 = vpack.c.b16 %v118, %v116
  %v133 = vpack.c.b16 %v121, %v119
  %v134 = vpack.c.b16 %v122, %v120
  %v135 = vpack.c.b16 %v125, %v123
  %v136 = vpack.c.b16 %v126, %v124
  %v137 = vpack.c.b16 %v129, %v127
  %v138 = vpack.c.b16 %v130, %v128
  %vm147 = vcmask 523264
  %v149 = vsel %vm147, %v71, 0
  %v152 = vsel %vm147, %v72, 0
  %v155 = vsel %vm147, %v73, 0
  %v158 = vsel %vm147, %v74, 0
  %v161 = vsel %vm147, %v75, 0
  %v164 = vsel %vm147, %v76, 0
  %v167 = vsel %vm147, %v77, 0
  %v170 = vsel %vm147, %v78, 0
  %v173 = vsel %vm147, %v79, 0
  %v176 = vsel %vm147, %v80, 0
  %v179 = vsel %vm147, %v81, 0
  %v182 = vsel %vm147, %v82, 0
  %v185 = vsel %vm147, %v83, 0
  %v188 = vsel %vm147, %v84, 0
  %v191 = vsel %vm147, %v85, 0
  %v194 = vsel %vm147, %v86, 0
  %196 = vmatprep.subr.bf16.mxu0 %v132
  %197 = vmatpush1.bf16.msra.mxu0 %v131
  %198 = vmatprep.subr.bf16.mxu0 %v134
  %199 = vmatpush1.bf16.msra.mxu0 %v133
  %200 = vmatprep.subr.bf16.mxu0 %v136
  %201 = vmatpush1.bf16.msra.mxu0 %v135
  %202 = vmatprep.subr.bf16.mxu0 %v138
  %203 = vmatpush1.bf16.msra.mxu0 %v137
  %204 = vmatprep.subr.bf16.mxu0 0
  %205 = vmatpush1.bf16.msra.mxu0 0
  %206 = vmatprep.subr.bf16.mxu0 0
  %207 = vmatpush1.bf16.msra.mxu0 0
  %208 = vmatprep.subr.bf16.mxu0 0
  %209 = vmatpush1.bf16.msra.mxu0 0
  %210 = vmatprep.subr.bf16.mxu0 0
  %211 = vmatpush1.bf16.msra.mxu0 0
  %212 = vmatprep.subr.bf16.mxu0 0
  %213 = vmatpush1.bf16.msra.mxu0 0
  %214 = vmatprep.subr.bf16.mxu0 0
  %215 = vmatpush1.bf16.msra.mxu0 0
  %216 = vmatprep.subr.bf16.mxu0 0
  %217 = vmatpush1.bf16.msra.mxu0 0
  %218 = vmatprep.subr.bf16.mxu0 0
  %219 = vmatpush1.bf16.msra.mxu0 0
  %220 = vmatprep.subr.bf16.mxu0 0
  %221 = vmatpush1.bf16.msra.mxu0 0
  %222 = vmatprep.subr.bf16.mxu0 0
  %223 = vmatpush1.bf16.msra.mxu0 0
  %224 = vmatprep.subr.bf16.mxu0 0
  %225 = vmatpush1.bf16.msra.mxu0 0
  %226 = vmatprep.subr.bf16.mxu0 0
  %227 = vmatpush1.bf16.msra.mxu0 0
  %228 = vmatprep.mubr.bf16.mxu0 0
  %229 = vmatmul.mubr.bf16.gmra.mrb[0].mxu0 %v149
  %v230 = vpop.f32.mrb[0].mxu0
  %v231 = vadd.f32 %v100, %v230
  %v232 = vpop.f32.mrb[0].mxu0
  %v233 = vadd.f32 %v104, %v232
  %v234 = vpop.f32.mrb[0].mxu0
  %v235 = vadd.f32 %v100, %v234
  %v236 = vpop.f32.mrb[0].mxu0
  %v237 = vadd.f32 %v104, %v236
  %238 = vmatprep.mubr.bf16.mxu0 0
  %239 = vmatmul.mubr.bf16.gmra.mrb[0].mxu0 %v152
  %v240 = vpop.f32.mrb[0].mxu0
  %v241 = vadd.f32 %v100, %v240
  %v242 = vpop.f32.mrb[0].mxu0
  %v243 = vadd.f32 %v104, %v242
  %v244 = vpop.f32.mrb[0].mxu0
  %v245 = vadd.f32 %v100, %v244
  %v246 = vpop.f32.mrb[0].mxu0
  %v247 = vadd.f32 %v104, %v246
  %248 = vmatprep.mubr.bf16.mxu0 0
  %249 = vmatmul.mubr.bf16.gmra.mrb[0].mxu0 %v155
  %v250 = vpop.f32.mrb[0].mxu0
  %v251 = vadd.f32 %v100, %v250
  %v252 = vpop.f32.mrb[0].mxu0
  %v253 = vadd.f32 %v104, %v252
  %v254 = vpop.f32.mrb[0].mxu0
  %v255 = vadd.f32 %v100, %v254
  %v256 = vpop.f32.mrb[0].mxu0
  %v257 = vadd.f32 %v104, %v256
  %258 = vmatprep.mubr.bf16.mxu0 0
  %259 = vmatmul.mubr.bf16.gmra.mrb[0].mxu0 %v158
  %v260 = vpop.f32.mrb[0].mxu0
  %v261 = vadd.f32 %v100, %v260
  %v262 = vpop.f32.mrb[0].mxu0
  %v263 = vadd.f32 %v104, %v262
  %v264 = vpop.f32.mrb[0].mxu0
  %v265 = vadd.f32 %v100, %v264
  %v266 = vpop.f32.mrb[0].mxu0
  %v267 = vadd.f32 %v104, %v266
  %268 = vmatprep.mubr.bf16.mxu0 0
  %269 = vmatmul.mubr.bf16.gmra.mrb[0].mxu0 %v161
  %v270 = vpop.f32.mrb[0].mxu0
  %v271 = vadd.f32 %v100, %v270
  %v272 = vpop.f32.mrb[0].mxu0
  %v273 = vadd.f32 %v104, %v272
  %v274 = vpop.f32.mrb[0].mxu0
  %v275 = vadd.f32 %v100, %v274
  %v276 = vpop.f32.mrb[0].mxu0
  %v277 = vadd.f32 %v104, %v276
  %278 = vmatprep.mubr.bf16.mxu0 0
  %279 = vmatmul.mubr.bf16.gmra.mrb[0].mxu0 %v164
  %v280 = vpop.f32.mrb[0].mxu0
  %v281 = vadd.f32 %v100, %v280
  %v282 = vpop.f32.mrb[0].mxu0
  %v283 = vadd.f32 %v104, %v282
  %v284 = vpop.f32.mrb[0].mxu0
  %v285 = vadd.f32 %v100, %v284
  %v286 = vpop.f32.mrb[0].mxu0
  %v287 = vadd.f32 %v104, %v286
  %288 = vmatprep.mubr.bf16.mxu0 0
  %289 = vmatmul.mubr.bf16.gmra.mrb[0].mxu0 %v167
  %v290 = vpop.f32.mrb[0].mxu0
  %v291 = vadd.f32 %v100, %v290
  %v292 = vpop.f32.mrb[0].mxu0
  %v293 = vadd.f32 %v104, %v292
  %v294 = vpop.f32.mrb[0].mxu0
  %v295 = vadd.f32 %v100, %v294
  %v296 = vpop.f32.mrb[0].mxu0
  %v297 = vadd.f32 %v104, %v296
  %298 = vmatprep.mubr.bf16.mxu0 0
  %299 = vmatmul.mubr.bf16.gmra.mrb[0].mxu0 %v170
  %v300 = vpop.f32.mrb[0].mxu0
  %v301 = vadd.f32 %v100, %v300
  %v302 = vpop.f32.mrb[0].mxu0
  %v303 = vadd.f32 %v104, %v302
  %v304 = vpop.f32.mrb[0].mxu0
  %v305 = vadd.f32 %v100, %v304
  %v306 = vpop.f32.mrb[0].mxu0
  %v307 = vadd.f32 %v104, %v306
  %308 = vmatprep.mubr.bf16.mxu0 0
  %309 = vmatmul.mubr.bf16.gmra.mrb[0].mxu0 %v173
  %v310 = vpop.f32.mrb[0].mxu0
  %v311 = vadd.f32 %v100, %v310
  %v312 = vpop.f32.mrb[0].mxu0
  %v313 = vadd.f32 %v104, %v312
  %v314 = vpop.f32.mrb[0].mxu0
  %v315 = vadd.f32 %v100, %v314
  %v316 = vpop.f32.mrb[0].mxu0
  %v317 = vadd.f32 %v104, %v316
  %318 = vmatprep.mubr.bf16.mxu0 0
  %319 = vmatmul.mubr.bf16.gmra.mrb[0].mxu0 %v176
  %v320 = vpop.f32.mrb[0].mxu0
  %v321 = vadd.f32 %v100, %v320
  %v322 = vpop.f32.mrb[0].mxu0
  %v323 = vadd.f32 %v104, %v322
  %v324 = vpop.f32.mrb[0].mxu0
  %v325 = vadd.f32 %v100, %v324
  %v326 = vpop.f32.mrb[0].mxu0
  %v327 = vadd.f32 %v104, %v326
  %328 = vmatprep.mubr.bf16.mxu0 0
  %329 = vmatmul.mubr.bf16.gmra.mrb[0].mxu0 %v179
  %v330 = vpop.f32.mrb[0].mxu0
  %v331 = vadd.f32 %v100, %v330
  %v332 = vpop.f32.mrb[0].mxu0
  %v333 = vadd.f32 %v104, %v332
  %v334 = vpop.f32.mrb[0].mxu0
  %v335 = vadd.f32 %v100, %v334
  %v336 = vpop.f32.mrb[0].mxu0
  %v337 = vadd.f32 %v104, %v336
  %338 = vmatprep.mubr.bf16.mxu0 0
  %339 = vmatmul.mubr.bf16.gmra.mrb[0].mxu0 %v182
  %v340 = vpop.f32.mrb[0].mxu0
  %v341 = vadd.f32 %v100, %v340
  %v342 = vpop.f32.mrb[0].mxu0
  %v343 = vadd.f32 %v104, %v342
  %v344 = vpop.f32.mrb[0].mxu0
  %v345 = vadd.f32 %v100, %v344
  %v346 = vpop.f32.mrb[0].mxu0
  %v347 = vadd.f32 %v104, %v346
  %348 = vmatprep.mubr.bf16.mxu0 0
  %349 = vmatmul.mubr.bf16.gmra.mrb[0].mxu0 %v185
  %v350 = vpop.f32.mrb[0].mxu0
  %v351 = vadd.f32 %v100, %v350
  %v352 = vpop.f32.mrb[0].mxu0
  %v353 = vadd.f32 %v104, %v352
  %v354 = vpop.f32.mrb[0].mxu0
  %v355 = vadd.f32 %v100, %v354
  %v356 = vpop.f32.mrb[0].mxu0
  %v357 = vadd.f32 %v104, %v356
  %358 = vmatprep.mubr.bf16.mxu0 0
  %359 = vmatmul.mubr.bf16.gmra.mrb[0].mxu0 %v188
  %v360 = vpop.f32.mrb[0].mxu0
  %v361 = vadd.f32 %v100, %v360
  %v362 = vpop.f32.mrb[0].mxu0
  %v363 = vadd.f32 %v104, %v362
  %v364 = vpop.f32.mrb[0].mxu0
  %v365 = vadd.f32 %v100, %v364
  %v366 = vpop.f32.mrb[0].mxu0
  %v367 = vadd.f32 %v104, %v366
  %368 = vmatprep.mubr.bf16.mxu0 0
  %369 = vmatmul.mubr.bf16.gmra.mrb[0].mxu0 %v191
  %v370 = vpop.f32.mrb[0].mxu0
  %v371 = vadd.f32 %v100, %v370
  %v372 = vpop.f32.mrb[0].mxu0
  %v373 = vadd.f32 %v104, %v372
  %v374 = vpop.f32.mrb[0].mxu0
  %v375 = vadd.f32 %v100, %v374
  %v376 = vpop.f32.mrb[0].mxu0
  %v377 = vadd.f32 %v104, %v376
  %378 = vmatprep.mubr.bf16.mxu0 0
  %379 = vmatmul.mubr.bf16.gmra.mrb[0].mxu0 %v194
  %v380 = vpop.f32.mrb[0].mxu0
  %v381 = vadd.f32 %v100, %v380
  %v382 = vpop.f32.mrb[0].mxu0
  %v383 = vadd.f32 %v104, %v382
  %v384 = vpop.f32.mrb[0].mxu0
  %v385 = vadd.f32 %v100, %v384
  %v386 = vpop.f32.mrb[0].mxu0
  %v387 = vadd.f32 %v104, %v386
  %388 = vdwg.mxu0
  %v389 = vmax.f32 %v231, 0.0
  %v390 = vmax.f32 %v233, 0.0
  %v391 = vmax.f32 %v235, 0.0
  %v392 = vmax.f32 %v237, 0.0
  %v393 = vmax.f32 %v241, 0.0
  %v394 = vmax.f32 %v243, 0.0
  %v395 = vmax.f32 %v245, 0.0
  %v396 = vmax.f32 %v247, 0.0
  %v397 = vmax.f32 %v251, 0.0
  %v398 = vmax.f32 %v253, 0.0
  %v399 = vmax.f32 %v255, 0.0
  %v400 = vmax.f32 %v257, 0.0
  %v401 = vmax.f32 %v261, 0.0
  %v402 = vmax.f32 %v263, 0.0
  %v403 = vmax.f32 %v265, 0.0
  %v404 = vmax.f32 %v267, 0.0
  %v405 = vmax.f32 %v271, 0.0
  %v406 = vmax.f32 %v273, 0.0
  %v407 = vmax.f32 %v275, 0.0
  %v408 = vmax.f32 %v277, 0.0
  %v409 = vmax.f32 %v281, 0.0
  %v410 = vmax.f32 %v283, 0.0
  %v411 = vmax.f32 %v285, 0.0
  %v412 = vmax.f32 %v287, 0.0
  %v413 = vmax.f32 %v291, 0.0
  %v414 = vmax.f32 %v293, 0.0
  %v415 = vmax.f32 %v295, 0.0
  %v416 = vmax.f32 %v297, 0.0
  %v417 = vmax.f32 %v301, 0.0
  %v418 = vmax.f32 %v303, 0.0
  %v419 = vmax.f32 %v305, 0.0
  %v420 = vmax.f32 %v307, 0.0
  %v421 = vmax.f32 %v311, 0.0
  %v422 = vmax.f32 %v313, 0.0
  %v423 = vmax.f32 %v315, 0.0
  %v424 = vmax.f32 %v317, 0.0
  %v425 = vmax.f32 %v321, 0.0
  %v426 = vmax.f32 %v323, 0.0
  %v427 = vmax.f32 %v325, 0.0
  %v428 = vmax.f32 %v327, 0.0
  %v429 = vmax.f32 %v331, 0.0
  %v430 = vmax.f32 %v333, 0.0
  %v431 = vmax.f32 %v335, 0.0
  %v432 = vmax.f32 %v337, 0.0
  %v433 = vmax.f32 %v341, 0.0
  %v434 = vmax.f32 %v343, 0.0
  %v435 = vmax.f32 %v345, 0.0
  %v436 = vmax.f32 %v347, 0.0
  %v437 = vmax.f32 %v351, 0.0
  %v438 = vmax.f32 %v353, 0.0
  %v439 = vmax.f32 %v355, 0.0
  %v440 = vmax.f32 %v357, 0.0
  %v441 = vmax.f32 %v361, 0.0
  %v442 = vmax.f32 %v363, 0.0
  %v443 = vmax.f32 %v365, 0.0
  %v444 = vmax.f32 %v367, 0.0
  %v445 = vmax.f32 %v371, 0.0
  %v446 = vmax.f32 %v373, 0.0
  %v447 = vmax.f32 %v375, 0.0
  %v448 = vmax.f32 %v377, 0.0
  %v449 = vmax.f32 %v381, 0.0
  %v450 = vmax.f32 %v383, 0.0
  %v451 = vmax.f32 %v385, 0.0
  %v452 = vmax.f32 %v387, 0.0
  %v453 = vpack.c.bf16 %v391, %v389
  %v454 = vpack.c.bf16 %v392, %v390
  %v455 = vpack.c.bf16 %v395, %v393
  %v456 = vpack.c.bf16 %v396, %v394
  %v457 = vpack.c.bf16 %v399, %v397
  %v458 = vpack.c.bf16 %v400, %v398
  %v459 = vpack.c.bf16 %v403, %v401
  %v460 = vpack.c.bf16 %v404, %v402
  %v461 = vpack.c.bf16 %v407, %v405
  %v462 = vpack.c.bf16 %v408, %v406
  %v463 = vpack.c.bf16 %v411, %v409
  %v464 = vpack.c.bf16 %v412, %v410
  %v465 = vpack.c.bf16 %v415, %v413
  %v466 = vpack.c.bf16 %v416, %v414
  %v467 = vpack.c.bf16 %v419, %v417
  %v468 = vpack.c.bf16 %v420, %v418
  %v469 = vpack.c.bf16 %v423, %v421
  %v470 = vpack.c.bf16 %v424, %v422
  %v471 = vpack.c.bf16 %v427, %v425
  %v472 = vpack.c.bf16 %v428, %v426
  %v473 = vpack.c.bf16 %v431, %v429
  %v474 = vpack.c.bf16 %v432, %v430
  %v475 = vpack.c.bf16 %v435, %v433
  %v476 = vpack.c.bf16 %v436, %v434
  %v477 = vpack.c.bf16 %v439, %v437
  %v478 = vpack.c.bf16 %v440, %v438
  %v479 = vpack.c.bf16 %v443, %v441
  %v480 = vpack.c.bf16 %v444, %v442
  %v481 = vpack.c.bf16 %v447, %v445
  %v482 = vpack.c.bf16 %v448, %v446
  %v483 = vpack.c.bf16 %v451, %v449
  %v484 = vpack.c.bf16 %v452, %v450
  %v485 = vld [vmem:[%s3] sm:$0xf]
  %v486 = vld [vmem:[%s3 + $0x4] sm:$0xf]
  %v487 = vld [vmem:[%s3 + $0x8] sm:$0xf]
  %v488 = vld [vmem:[%s3 + $0xc] sm:$0xf]
  %v489 = vld [vmem:[%s3 + $0x10] sm:$0xf]
  %v490 = vld [vmem:[%s3 + $0x14] sm:$0xf]
  %v491 = vld [vmem:[%s3 + $0x18] sm:$0xf]
  %v492 = vld [vmem:[%s3 + $0x1c] sm:$0xf]
  %v493 = vld [vmem:[%s3 + $0x20] sm:$0xf]
  %v494 = vld [vmem:[%s3 + $0x24] sm:$0xf]
  %v495 = vld [vmem:[%s3 + $0x28] sm:$0xf]
  %v496 = vld [vmem:[%s3 + $0x2c] sm:$0xf]
  %v497 = vld [vmem:[%s3 + $0x30] sm:$0xf]
  %v498 = vld [vmem:[%s3 + $0x34] sm:$0xf]
  %v499 = vld [vmem:[%s3 + $0x38] sm:$0xf]
  %v500 = vld [vmem:[%s3 + $0x3c] sm:$0xf]
  %v501 = vld [vmem:[%s3 + $0x40] sm:$0xf]
  %v502 = vld [vmem:[%s3 + $0x44] sm:$0xf]
  %v503 = vld [vmem:[%s3 + $0x48] sm:$0xf]
  %v504 = vld [vmem:[%s3 + $0x4c] sm:$0xf]
  %v505 = vld [vmem:[%s3 + $0x50] sm:$0xf]
  %v506 = vld [vmem:[%s3 + $0x54] sm:$0xf]
  %v507 = vld [vmem:[%s3 + $0x58] sm:$0xf]
  %v508 = vld [vmem:[%s3 + $0x5c] sm:$0xf]
  %v509 = vld [vmem:[%s3 + $0x60] sm:$0xf]
  %v510 = vld [vmem:[%s3 + $0x64] sm:$0xf]
  %v511 = vld [vmem:[%s3 + $0x68] sm:$0xf]
  %v512 = vld [vmem:[%s3 + $0x6c] sm:$0xf]
  %v513 = vld [vmem:[%s3 + $0x70] sm:$0xf]
  %v514 = vld [vmem:[%s3 + $0x74] sm:$0xf]
  %v515 = vld [vmem:[%s3 + $0x78] sm:$0xf]
  %v516 = vld [vmem:[%s3 + $0x7c] sm:$0xf]
  %v517 = vld [vmem:[%s4] sm:$0x1]
  %v519 = vlaneseq
  %v520 = vshrl.u32 %v519, 7
  %v521 = vsub.s32 0, %v520
  %v522 = vrot.slane %v517, %v521
  %v556 = vunpack.c.l.b16 %v485
  %v557 = vunpack.c.l.b16 %v486
  %v558 = vunpack.c.l.b16 %v487
  %v559 = vunpack.c.l.b16 %v488
  %v560 = vunpack.c.l.b16 %v489
  %v561 = vunpack.c.l.b16 %v490
  %v562 = vunpack.c.l.b16 %v491
  %v563 = vunpack.c.l.b16 %v492
  %v564 = vunpack.c.l.b16 %v493
  %v565 = vunpack.c.l.b16 %v494
  %v566 = vunpack.c.l.b16 %v495
  %v567 = vunpack.c.l.b16 %v496
  %v568 = vunpack.c.l.b16 %v497
  %v569 = vunpack.c.l.b16 %v498
  %v570 = vunpack.c.l.b16 %v499
  %v571 = vunpack.c.l.b16 %v500
  %v572 = vunpack.c.l.b16 %v501
  %v573 = vunpack.c.l.b16 %v502
  %v574 = vunpack.c.l.b16 %v503
  %v575 = vunpack.c.l.b16 %v504
  %v576 = vunpack.c.l.b16 %v505
  %v577 = vunpack.c.l.b16 %v506
  %v578 = vunpack.c.l.b16 %v507
  %v579 = vunpack.c.l.b16 %v508
  %v580 = vunpack.c.l.b16 %v509
  %v581 = vunpack.c.l.b16 %v510
  %v582 = vunpack.c.l.b16 %v511
  %v583 = vunpack.c.l.b16 %v512
  %v584 = vunpack.c.l.b16 %v513
  %v585 = vunpack.c.l.b16 %v514
  %v586 = vunpack.c.l.b16 %v515
  %v587 = vunpack.c.l.b16 %v516
  %v588 = vpack.c.b16 %v557, %v556
  %v589 = vpack.c.b16 %v559, %v558
  %v590 = vpack.c.b16 %v561, %v560
  %v591 = vpack.c.b16 %v563, %v562
  %v592 = vpack.c.b16 %v565, %v564
  %v593 = vpack.c.b16 %v567, %v566
  %v594 = vpack.c.b16 %v569, %v568
  %v595 = vpack.c.b16 %v571, %v570
  %v596 = vpack.c.b16 %v573, %v572
  %v597 = vpack.c.b16 %v575, %v574
  %v598 = vpack.c.b16 %v577, %v576
  %v599 = vpack.c.b16 %v579, %v578
  %v600 = vpack.c.b16 %v581, %v580
  %v601 = vpack.c.b16 %v583, %v582
  %v602 = vpack.c.b16 %v585, %v584
  %v603 = vpack.c.b16 %v587, %v586
  %620 = vmatprep.subr.bf16.mxu0 0
  %621 = vmatpush1.bf16.msra.mxu0 %v588
  %622 = vmatprep.subr.bf16.mxu0 0
  %623 = vmatpush1.bf16.msra.mxu0 %v589
  %624 = vmatprep.subr.bf16.mxu0 0
  %625 = vmatpush1.bf16.msra.mxu0 %v590
  %626 = vmatprep.subr.bf16.mxu0 0
  %627 = vmatpush1.bf16.msra.mxu0 %v591
  %628 = vmatprep.subr.bf16.mxu0 0
  %629 = vmatpush1.bf16.msra.mxu0 %v592
  %630 = vmatprep.subr.bf16.mxu0 0
  %631 = vmatpush1.bf16.msra.mxu0 %v593
  %632 = vmatprep.subr.bf16.mxu0 0
  %633 = vmatpush1.bf16.msra.mxu0 %v594
  %634 = vmatprep.subr.bf16.mxu0 0
  %635 = vmatpush1.bf16.msra.mxu0 %v595
  %636 = vmatprep.subr.bf16.mxu0 0
  %637 = vmatpush1.bf16.msra.mxu0 %v596
  %638 = vmatprep.subr.bf16.mxu0 0
  %639 = vmatpush1.bf16.msra.mxu0 %v597
  %640 = vmatprep.subr.bf16.mxu0 0
  %641 = vmatpush1.bf16.msra.mxu0 %v598
  %642 = vmatprep.subr.bf16.mxu0 0
  %643 = vmatpush1.bf16.msra.mxu0 %v599
  %644 = vmatprep.subr.bf16.mxu0 0
  %645 = vmatpush1.bf16.msra.mxu0 %v600
  %646 = vmatprep.subr.bf16.mxu0 0
  %647 = vmatpush1.bf16.msra.mxu0 %v601
  %648 = vmatprep.subr.bf16.mxu0 0
  %649 = vmatpush1.bf16.msra.mxu0 %v602
  %650 = vmatprep.subr.bf16.mxu0 0
  %651 = vmatpush1.bf16.msra.mxu0 %v603
  %652 = vmatprep.mubr.bf16.mxu0 %v454
  %653 = vmatmul.mubr.bf16.gmra.mrb[0].mxu0 %v453
  %v654 = vpop.f32.mrb[0].mxu0
  %v655 = vadd.f32 %v522, %v654
  %v656 = vpop.f32.mrb[0].mxu0
  %v657 = vpop.f32.mrb[0].mxu0
  %v658 = vadd.f32 %v522, %v657
  %v659 = vpop.f32.mrb[0].mxu0
  %660 = vmatprep.mubr.bf16.mxu0 %v456
  %661 = vmatmul.mubr.bf16.gmra.mrb[0].mxu0 %v455
  %v662 = vpop.f32.mrb[0].mxu0
  %v663 = vadd.f32 %v522, %v662
  %v664 = vpop.f32.mrb[0].mxu0
  %v665 = vpop.f32.mrb[0].mxu0
  %v666 = vadd.f32 %v522, %v665
  %v667 = vpop.f32.mrb[0].mxu0
  %668 = vmatprep.mubr.bf16.mxu0 %v458
  %669 = vmatmul.mubr.bf16.gmra.mrb[0].mxu0 %v457
  %v670 = vpop.f32.mrb[0].mxu0
  %v671 = vadd.f32 %v522, %v670
  %v672 = vpop.f32.mrb[0].mxu0
  %v673 = vpop.f32.mrb[0].mxu0
  %v674 = vadd.f32 %v522, %v673
  %v675 = vpop.f32.mrb[0].mxu0
  %676 = vmatprep.mubr.bf16.mxu0 %v460
  %677 = vmatmul.mubr.bf16.gmra.mrb[0].mxu0 %v459
  %v678 = vpop.f32.mrb[0].mxu0
  %v679 = vadd.f32 %v522, %v678
  %v680 = vpop.f32.mrb[0].mxu0
  %v681 = vpop.f32.mrb[0].mxu0
  %v682 = vadd.f32 %v522, %v681
  %v683 = vpop.f32.mrb[0].mxu0
  %684 = vmatprep.mubr.bf16.mxu0 %v462
  %685 = vmatmul.mubr.bf16.gmra.mrb[0].mxu0 %v461
  %v686 = vpop.f32.mrb[0].mxu0
  %v687 = vadd.f32 %v522, %v686
  %v688 = vpop.f32.mrb[0].mxu0
  %v689 = vpop.f32.mrb[0].mxu0
  %v690 = vadd.f32 %v522, %v689
  %v691 = vpop.f32.mrb[0].mxu0
  %692 = vmatprep.mubr.bf16.mxu0 %v464
  %693 = vmatmul.mubr.bf16.gmra.mrb[0].mxu0 %v463
  %v694 = vpop.f32.mrb[0].mxu0
  %v695 = vadd.f32 %v522, %v694
  %v696 = vpop.f32.mrb[0].mxu0
  %v697 = vpop.f32.mrb[0].mxu0
  %v698 = vadd.f32 %v522, %v697
  %v699 = vpop.f32.mrb[0].mxu0
  %700 = vmatprep.mubr.bf16.mxu0 %v466
  %701 = vmatmul.mubr.bf16.gmra.mrb[0].mxu0 %v465
  %v702 = vpop.f32.mrb[0].mxu0
  %v703 = vadd.f32 %v522, %v702
  %v704 = vpop.f32.mrb[0].mxu0
  %v705 = vpop.f32.mrb[0].mxu0
  %v706 = vadd.f32 %v522, %v705
  %v707 = vpop.f32.mrb[0].mxu0
  %708 = vmatprep.mubr.bf16.mxu0 %v468
  %709 = vmatmul.mubr.bf16.gmra.mrb[0].mxu0 %v467
  %v710 = vpop.f32.mrb[0].mxu0
  %v711 = vadd.f32 %v522, %v710
  %v712 = vpop.f32.mrb[0].mxu0
  %v713 = vpop.f32.mrb[0].mxu0
  %v714 = vadd.f32 %v522, %v713
  %v715 = vpop.f32.mrb[0].mxu0
  %716 = vmatprep.mubr.bf16.mxu0 %v470
  %717 = vmatmul.mubr.bf16.gmra.mrb[0].mxu0 %v469
  %v718 = vpop.f32.mrb[0].mxu0
  %v719 = vadd.f32 %v522, %v718
  %v720 = vpop.f32.mrb[0].mxu0
  %v721 = vpop.f32.mrb[0].mxu0
  %v722 = vadd.f32 %v522, %v721
  %v723 = vpop.f32.mrb[0].mxu0
  %724 = vmatprep.mubr.bf16.mxu0 %v472
  %725 = vmatmul.mubr.bf16.gmra.mrb[0].mxu0 %v471
  %v726 = vpop.f32.mrb[0].mxu0
  %v727 = vadd.f32 %v522, %v726
  %v728 = vpop.f32.mrb[0].mxu0
  %v729 = vpop.f32.mrb[0].mxu0
  %v730 = vadd.f32 %v522, %v729
  %v731 = vpop.f32.mrb[0].mxu0
  %732 = vmatprep.mubr.bf16.mxu0 %v474
  %733 = vmatmul.mubr.bf16.gmra.mrb[0].mxu0 %v473
  %v734 = vpop.f32.mrb[0].mxu0
  %v735 = vadd.f32 %v522, %v734
  %v736 = vpop.f32.mrb[0].mxu0
  %v737 = vpop.f32.mrb[0].mxu0
  %v738 = vadd.f32 %v522, %v737
  %v739 = vpop.f32.mrb[0].mxu0
  %740 = vmatprep.mubr.bf16.mxu0 %v476
  %741 = vmatmul.mubr.bf16.gmra.mrb[0].mxu0 %v475
  %v742 = vpop.f32.mrb[0].mxu0
  %v743 = vadd.f32 %v522, %v742
  %v744 = vpop.f32.mrb[0].mxu0
  %v745 = vpop.f32.mrb[0].mxu0
  %v746 = vadd.f32 %v522, %v745
  %v747 = vpop.f32.mrb[0].mxu0
  %748 = vmatprep.mubr.bf16.mxu0 %v478
  %749 = vmatmul.mubr.bf16.gmra.mrb[0].mxu0 %v477
  %v750 = vpop.f32.mrb[0].mxu0
  %v751 = vadd.f32 %v522, %v750
  %v752 = vpop.f32.mrb[0].mxu0
  %v753 = vpop.f32.mrb[0].mxu0
  %v754 = vadd.f32 %v522, %v753
  %v755 = vpop.f32.mrb[0].mxu0
  %756 = vmatprep.mubr.bf16.mxu0 %v480
  %757 = vmatmul.mubr.bf16.gmra.mrb[0].mxu0 %v479
  %v758 = vpop.f32.mrb[0].mxu0
  %v759 = vadd.f32 %v522, %v758
  %v760 = vpop.f32.mrb[0].mxu0
  %v761 = vpop.f32.mrb[0].mxu0
  %v762 = vadd.f32 %v522, %v761
  %v763 = vpop.f32.mrb[0].mxu0
  %764 = vmatprep.mubr.bf16.mxu0 %v482
  %765 = vmatmul.mubr.bf16.gmra.mrb[0].mxu0 %v481
  %v766 = vpop.f32.mrb[0].mxu0
  %v767 = vadd.f32 %v522, %v766
  %v768 = vpop.f32.mrb[0].mxu0
  %v769 = vpop.f32.mrb[0].mxu0
  %v770 = vadd.f32 %v522, %v769
  %v771 = vpop.f32.mrb[0].mxu0
  %772 = vmatprep.mubr.bf16.mxu0 %v484
  %773 = vmatmul.mubr.bf16.gmra.mrb[0].mxu0 %v483
  %v774 = vpop.f32.mrb[0].mxu0
  %v775 = vadd.f32 %v522, %v774
  %v776 = vpop.f32.mrb[0].mxu0
  %v777 = vpop.f32.mrb[0].mxu0
  %v778 = vadd.f32 %v522, %v777
  %v779 = vpop.f32.mrb[0].mxu0
  %780 = vdwg.mxu0
  %v781 = vmax.f32 %v655, 0.0
  %v782 = vmax.f32 %v658, 0.0
  %v783 = vmax.f32 %v663, 0.0
  %v784 = vmax.f32 %v666, 0.0
  %v785 = vmax.f32 %v671, 0.0
  %v786 = vmax.f32 %v674, 0.0
  %v787 = vmax.f32 %v679, 0.0
  %v788 = vmax.f32 %v682, 0.0
  %v789 = vmax.f32 %v687, 0.0
  %v790 = vmax.f32 %v690, 0.0
  %v791 = vmax.f32 %v695, 0.0
  %v792 = vmax.f32 %v698, 0.0
  %v793 = vmax.f32 %v703, 0.0
  %v794 = vmax.f32 %v706, 0.0
  %v795 = vmax.f32 %v711, 0.0
  %v796 = vmax.f32 %v714, 0.0
  %v797 = vmax.f32 %v719, 0.0
  %v798 = vmax.f32 %v722, 0.0
  %v799 = vmax.f32 %v727, 0.0
  %v800 = vmax.f32 %v730, 0.0
  %v801 = vmax.f32 %v735, 0.0
  %v802 = vmax.f32 %v738, 0.0
  %v803 = vmax.f32 %v743, 0.0
  %v804 = vmax.f32 %v746, 0.0
  %v805 = vmax.f32 %v751, 0.0
  %v806 = vmax.f32 %v754, 0.0
  %v807 = vmax.f32 %v759, 0.0
  %v808 = vmax.f32 %v762, 0.0
  %v809 = vmax.f32 %v767, 0.0
  %v810 = vmax.f32 %v770, 0.0
  %v811 = vmax.f32 %v775, 0.0
  %v812 = vmax.f32 %v778, 0.0
  %v813 = vpack.c.bf16 %v782, %v781
  %v814 = vpack.c.bf16 %v784, %v783
  %v815 = vpack.c.bf16 %v786, %v785
  %v816 = vpack.c.bf16 %v788, %v787
  %v817 = vpack.c.bf16 %v790, %v789
  %v818 = vpack.c.bf16 %v792, %v791
  %v819 = vpack.c.bf16 %v794, %v793
  %v820 = vpack.c.bf16 %v796, %v795
  %v821 = vpack.c.bf16 %v798, %v797
  %v822 = vpack.c.bf16 %v800, %v799
  %v823 = vpack.c.bf16 %v802, %v801
  %v824 = vpack.c.bf16 %v804, %v803
  %v825 = vpack.c.bf16 %v806, %v805
  %v826 = vpack.c.bf16 %v808, %v807
  %v827 = vpack.c.bf16 %v810, %v809
  %v828 = vpack.c.bf16 %v812, %v811
  %v829 = vld [vmem:[%s5] sm:$0xf]
  %v830 = vld [vmem:[%s5 + $0x4] sm:$0xf]
  %v831 = vld [vmem:[%s5 + $0x8] sm:$0xf]
  %v832 = vld [vmem:[%s5 + $0xc] sm:$0xf]
  %v833 = vld [vmem:[%s5 + $0x10] sm:$0xf]
  %v834 = vld [vmem:[%s5 + $0x14] sm:$0xf]
  %v835 = vld [vmem:[%s5 + $0x18] sm:$0xf]
  %v836 = vld [vmem:[%s5 + $0x1c] sm:$0xf]
  %v837 = vld [vmem:[%s5 + $0x20] sm:$0xf]
  %v838 = vld [vmem:[%s5 + $0x24] sm:$0xf]
  %v839 = vld [vmem:[%s5 + $0x28] sm:$0xf]
  %v840 = vld [vmem:[%s5 + $0x2c] sm:$0xf]
  %v841 = vld [vmem:[%s5 + $0x30] sm:$0xf]
  %v842 = vld [vmem:[%s5 + $0x34] sm:$0xf]
  %v843 = vld [vmem:[%s5 + $0x38] sm:$0xf]
  %v844 = vld [vmem:[%s5 + $0x3c] sm:$0xf]
  %v845 = vld [vmem:[%s6] sm:$0x1]
  %v847 = vlaneseq
  %v848 = vshrl.u32 %v847, 7
  %v849 = vsub.s32 0, %v848
  %v850 = vrot.slane %v845, %v849
  %v868 = vunpack.c.l.b16 %v829
  %v869 = vunpack.c.l.b16 %v830
  %v870 = vunpack.c.l.b16 %v831
  %v871 = vunpack.c.l.b16 %v832
  %v872 = vunpack.c.l.b16 %v833
  %v873 = vunpack.c.l.b16 %v834
  %v874 = vunpack.c.l.b16 %v835
  %v875 = vunpack.c.l.b16 %v836
  %v876 = vunpack.c.l.b16 %v837
  %v877 = vunpack.c.l.b16 %v838
  %v878 = vunpack.c.l.b16 %v839
  %v879 = vunpack.c.l.b16 %v840
  %v880 = vunpack.c.l.b16 %v841
  %v881 = vunpack.c.l.b16 %v842
  %v882 = vunpack.c.l.b16 %v843
  %v883 = vunpack.c.l.b16 %v844
  %v884 = vpack.c.b16 %v869, %v868
  %v885 = vpack.c.b16 %v871, %v870
  %v886 = vpack.c.b16 %v873, %v872
  %v887 = vpack.c.b16 %v875, %v874
  %v888 = vpack.c.b16 %v877, %v876
  %v889 = vpack.c.b16 %v879, %v878
  %v890 = vpack.c.b16 %v881, %v880
  %v891 = vpack.c.b16 %v883, %v882
  %900 = vmatprep.subr.bf16.mxu0 0
  %901 = vmatpush1.bf16.msra.mxu0 %v884
  %902 = vmatprep.subr.bf16.mxu0 0
  %903 = vmatpush1.bf16.msra.mxu0 %v885
  %904 = vmatprep.subr.bf16.mxu0 0
  %905 = vmatpush1.bf16.msra.mxu0 %v886
  %906 = vmatprep.subr.bf16.mxu0 0
  %907 = vmatpush1.bf16.msra.mxu0 %v887
  %908 = vmatprep.subr.bf16.mxu0 0
  %909 = vmatpush1.bf16.msra.mxu0 %v888
  %910 = vmatprep.subr.bf16.mxu0 0
  %911 = vmatpush1.bf16.msra.mxu0 %v889
  %912 = vmatprep.subr.bf16.mxu0 0
  %913 = vmatpush1.bf16.msra.mxu0 %v890
  %914 = vmatprep.subr.bf16.mxu0 0
  %915 = vmatpush1.bf16.msra.mxu0 %v891
  %916 = vmatprep.subr.bf16.mxu0 0
  %917 = vmatpush1.bf16.msra.mxu0 0
  %918 = vmatprep.subr.bf16.mxu0 0
  %919 = vmatpush1.bf16.msra.mxu0 0
  %920 = vmatprep.subr.bf16.mxu0 0
  %921 = vmatpush1.bf16.msra.mxu0 0
  %922 = vmatprep.subr.bf16.mxu0 0
  %923 = vmatpush1.bf16.msra.mxu0 0
  %924 = vmatprep.subr.bf16.mxu0 0
  %925 = vmatpush1.bf16.msra.mxu0 0
  %926 = vmatprep.subr.bf16.mxu0 0
  %927 = vmatpush1.bf16.msra.mxu0 0
  %928 = vmatprep.subr.bf16.mxu0 0
  %929 = vmatpush1.bf16.msra.mxu0 0
  %930 = vmatprep.subr.bf16.mxu0 0
  %931 = vmatpush1.bf16.msra.mxu0 0
  %932 = vmatprep.mubr.bf16.mxu0 0
  %933 = vmatmul.mubr.bf16.gmra.mrb[0].mxu0 %v813
  %v934 = vpop.f32.mrb[0].mxu0
  %v935 = vadd.f32 %v850, %v934
  %v936 = vpop.f32.mrb[0].mxu0
  %v937 = vpop.f32.mrb[0].mxu0
  %v938 = vadd.f32 %v850, %v937
  %v939 = vpop.f32.mrb[0].mxu0
  %940 = vmatprep.mubr.bf16.mxu0 0
  %941 = vmatmul.mubr.bf16.gmra.mrb[0].mxu0 %v814
  %v942 = vpop.f32.mrb[0].mxu0
  %v943 = vadd.f32 %v850, %v942
  %v944 = vpop.f32.mrb[0].mxu0
  %v945 = vpop.f32.mrb[0].mxu0
  %v946 = vadd.f32 %v850, %v945
  %v947 = vpop.f32.mrb[0].mxu0
  %948 = vmatprep.mubr.bf16.mxu0 0
  %949 = vmatmul.mubr.bf16.gmra.mrb[0].mxu0 %v815
  %v950 = vpop.f32.mrb[0].mxu0
  %v951 = vadd.f32 %v850, %v950
  %v952 = vpop.f32.mrb[0].mxu0
  %v953 = vpop.f32.mrb[0].mxu0
  %v954 = vadd.f32 %v850, %v953
  %v955 = vpop.f32.mrb[0].mxu0
  %956 = vmatprep.mubr.bf16.mxu0 0
  %957 = vmatmul.mubr.bf16.gmra.mrb[0].mxu0 %v816
  %v958 = vpop.f32.mrb[0].mxu0
  %v959 = vadd.f32 %v850, %v958
  %v960 = vpop.f32.mrb[0].mxu0
  %v961 = vpop.f32.mrb[0].mxu0
  %v962 = vadd.f32 %v850, %v961
  %v963 = vpop.f32.mrb[0].mxu0
  %964 = vmatprep.mubr.bf16.mxu0 0
  %965 = vmatmul.mubr.bf16.gmra.mrb[0].mxu0 %v817
  %v966 = vpop.f32.mrb[0].mxu0
  %v967 = vadd.f32 %v850, %v966
  %v968 = vpop.f32.mrb[0].mxu0
  %v969 = vpop.f32.mrb[0].mxu0
  %v970 = vadd.f32 %v850, %v969
  %v971 = vpop.f32.mrb[0].mxu0
  %972 = vmatprep.mubr.bf16.mxu0 0
  %973 = vmatmul.mubr.bf16.gmra.mrb[0].mxu0 %v818
  %v974 = vpop.f32.mrb[0].mxu0
  %v975 = vadd.f32 %v850, %v974
  %v976 = vpop.f32.mrb[0].mxu0
  %v977 = vpop.f32.mrb[0].mxu0
  %v978 = vadd.f32 %v850, %v977
  %v979 = vpop.f32.mrb[0].mxu0
  %980 = vmatprep.mubr.bf16.mxu0 0
  %981 = vmatmul.mubr.bf16.gmra.mrb[0].mxu0 %v819
  %v982 = vpop.f32.mrb[0].mxu0
  %v983 = vadd.f32 %v850, %v982
  %v984 = vpop.f32.mrb[0].mxu0
  %v985 = vpop.f32.mrb[0].mxu0
  %v986 = vadd.f32 %v850, %v985
  %v987 = vpop.f32.mrb[0].mxu0
  %988 = vmatprep.mubr.bf16.mxu0 0
  %989 = vmatmul.mubr.bf16.gmra.mrb[0].mxu0 %v820
  %v990 = vpop.f32.mrb[0].mxu0
  %v991 = vadd.f32 %v850, %v990
  %v992 = vpop.f32.mrb[0].mxu0
  %v993 = vpop.f32.mrb[0].mxu0
  %v994 = vadd.f32 %v850, %v993
  %v995 = vpop.f32.mrb[0].mxu0
  %996 = vmatprep.mubr.bf16.mxu0 0
  %997 = vmatmul.mubr.bf16.gmra.mrb[0].mxu0 %v821
  %v998 = vpop.f32.mrb[0].mxu0
  %v999 = vadd.f32 %v850, %v998
  %v1000 = vpop.f32.mrb[0].mxu0
  %v1001 = vpop.f32.mrb[0].mxu0
  %v1002 = vadd.f32 %v850, %v1001
  %v1003 = vpop.f32.mrb[0].mxu0
  %1004 = vmatprep.mubr.bf16.mxu0 0
  %1005 = vmatmul.mubr.bf16.gmra.mrb[0].mxu0 %v822
  %v1006 = vpop.f32.mrb[0].mxu0
  %v1007 = vadd.f32 %v850, %v1006
  %v1008 = vpop.f32.mrb[0].mxu0
  %v1009 = vpop.f32.mrb[0].mxu0
  %v1010 = vadd.f32 %v850, %v1009
  %v1011 = vpop.f32.mrb[0].mxu0
  %1012 = vmatprep.mubr.bf16.mxu0 0
  %1013 = vmatmul.mubr.bf16.gmra.mrb[0].mxu0 %v823
  %v1014 = vpop.f32.mrb[0].mxu0
  %v1015 = vadd.f32 %v850, %v1014
  %v1016 = vpop.f32.mrb[0].mxu0
  %v1017 = vpop.f32.mrb[0].mxu0
  %v1018 = vadd.f32 %v850, %v1017
  %v1019 = vpop.f32.mrb[0].mxu0
  %1020 = vmatprep.mubr.bf16.mxu0 0
  %1021 = vmatmul.mubr.bf16.gmra.mrb[0].mxu0 %v824
  %v1022 = vpop.f32.mrb[0].mxu0
  %v1023 = vadd.f32 %v850, %v1022
  %v1024 = vpop.f32.mrb[0].mxu0
  %v1025 = vpop.f32.mrb[0].mxu0
  %v1026 = vadd.f32 %v850, %v1025
  %v1027 = vpop.f32.mrb[0].mxu0
  %1028 = vmatprep.mubr.bf16.mxu0 0
  %1029 = vmatmul.mubr.bf16.gmra.mrb[0].mxu0 %v825
  %v1030 = vpop.f32.mrb[0].mxu0
  %v1031 = vadd.f32 %v850, %v1030
  %v1032 = vpop.f32.mrb[0].mxu0
  %v1033 = vpop.f32.mrb[0].mxu0
  %v1034 = vadd.f32 %v850, %v1033
  %v1035 = vpop.f32.mrb[0].mxu0
  %1036 = vmatprep.mubr.bf16.mxu0 0
  %1037 = vmatmul.mubr.bf16.gmra.mrb[0].mxu0 %v826
  %v1038 = vpop.f32.mrb[0].mxu0
  %v1039 = vadd.f32 %v850, %v1038
  %v1040 = vpop.f32.mrb[0].mxu0
  %v1041 = vpop.f32.mrb[0].mxu0
  %v1042 = vadd.f32 %v850, %v1041
  %v1043 = vpop.f32.mrb[0].mxu0
  %1044 = vmatprep.mubr.bf16.mxu0 0
  %1045 = vmatmul.mubr.bf16.gmra.mrb[0].mxu0 %v827
  %v1046 = vpop.f32.mrb[0].mxu0
  %v1047 = vadd.f32 %v850, %v1046
  %v1048 = vpop.f32.mrb[0].mxu0
  %v1049 = vpop.f32.mrb[0].mxu0
  %v1050 = vadd.f32 %v850, %v1049
  %v1051 = vpop.f32.mrb[0].mxu0
  %1052 = vmatprep.mubr.bf16.mxu0 0
  %1053 = vmatmul.mubr.bf16.gmra.mrb[0].mxu0 %v828
  %v1054 = vpop.f32.mrb[0].mxu0
  %v1055 = vadd.f32 %v850, %v1054
  %v1056 = vpop.f32.mrb[0].mxu0
  %v1057 = vpop.f32.mrb[0].mxu0
  %v1058 = vadd.f32 %v850, %v1057
  %v1059 = vpop.f32.mrb[0].mxu0
  %1060 = vdwg.mxu0
  %v1061 = vmax.f32 %v935, 0.0
  %v1062 = vmax.f32 %v938, 0.0
  %v1063 = vmax.f32 %v943, 0.0
  %v1064 = vmax.f32 %v946, 0.0
  %v1065 = vmax.f32 %v951, 0.0
  %v1066 = vmax.f32 %v954, 0.0
  %v1067 = vmax.f32 %v959, 0.0
  %v1068 = vmax.f32 %v962, 0.0
  %v1069 = vmax.f32 %v967, 0.0
  %v1070 = vmax.f32 %v970, 0.0
  %v1071 = vmax.f32 %v975, 0.0
  %v1072 = vmax.f32 %v978, 0.0
  %v1073 = vmax.f32 %v983, 0.0
  %v1074 = vmax.f32 %v986, 0.0
  %v1075 = vmax.f32 %v991, 0.0
  %v1076 = vmax.f32 %v994, 0.0
  %v1077 = vmax.f32 %v999, 0.0
  %v1078 = vmax.f32 %v1002, 0.0
  %v1079 = vmax.f32 %v1007, 0.0
  %v1080 = vmax.f32 %v1010, 0.0
  %v1081 = vmax.f32 %v1015, 0.0
  %v1082 = vmax.f32 %v1018, 0.0
  %v1083 = vmax.f32 %v1023, 0.0
  %v1084 = vmax.f32 %v1026, 0.0
  %v1085 = vmax.f32 %v1031, 0.0
  %v1086 = vmax.f32 %v1034, 0.0
  %v1087 = vmax.f32 %v1039, 0.0
  %v1088 = vmax.f32 %v1042, 0.0
  %v1089 = vmax.f32 %v1047, 0.0
  %v1090 = vmax.f32 %v1050, 0.0
  %v1091 = vmax.f32 %v1055, 0.0
  %v1092 = vmax.f32 %v1058, 0.0
  %v1093 = vpack.c.bf16 %v1062, %v1061
  %v1094 = vpack.c.bf16 %v1064, %v1063
  %v1095 = vpack.c.bf16 %v1066, %v1065
  %v1096 = vpack.c.bf16 %v1068, %v1067
  %v1097 = vpack.c.bf16 %v1070, %v1069
  %v1098 = vpack.c.bf16 %v1072, %v1071
  %v1099 = vpack.c.bf16 %v1074, %v1073
  %v1100 = vpack.c.bf16 %v1076, %v1075
  %v1101 = vpack.c.bf16 %v1078, %v1077
  %v1102 = vpack.c.bf16 %v1080, %v1079
  %v1103 = vpack.c.bf16 %v1082, %v1081
  %v1104 = vpack.c.bf16 %v1084, %v1083
  %v1105 = vpack.c.bf16 %v1086, %v1085
  %v1106 = vpack.c.bf16 %v1088, %v1087
  %v1107 = vpack.c.bf16 %v1090, %v1089
  %v1108 = vpack.c.bf16 %v1092, %v1091
  %v1109 = vld [vmem:[%s7] sm:$0xff]
  %v1110 = vld [vmem:[%s7 + $0x8] sm:$0xff]
  %v1111 = vld [vmem:[%s7 + $0x10] sm:$0xff]
  %v1112 = vld [vmem:[%s7 + $0x18] sm:$0xff]
  %v1113 = vld [vmem:[%s7 + $0x20] sm:$0xff]
  %v1114 = vld [vmem:[%s7 + $0x28] sm:$0xff]
  %v1115 = vld [vmem:[%s7 + $0x30] sm:$0xff]
  %v1116 = vld [vmem:[%s7 + $0x38] sm:$0xff]
  %v1117 = vld [vmem:[%s7 + $0x40] sm:$0xff]
  %v1118 = vld [vmem:[%s7 + $0x48] sm:$0xff]
  %v1119 = vld [vmem:[%s7 + $0x50] sm:$0xff]
  %v1120 = vld [vmem:[%s7 + $0x58] sm:$0xff]
  %v1121 = vld [vmem:[%s7 + $0x60] sm:$0xff]
  %v1122 = vld [vmem:[%s7 + $0x68] sm:$0xff]
  %v1123 = vld [vmem:[%s7 + $0x70] sm:$0xff]
  %v1124 = vld [vmem:[%s7 + $0x78] sm:$0xff]
  %v1125 = vld [vmem:[%s8] sm:$0x3]
  %v1127 = vlaneseq
  %v1128 = vshrl.u32 %v1127, 7
  %v1129 = vsub.s32 0, %v1128
  %v1130 = vrot.slane %v1125, %v1129
  %v1131 = vlaneseq
  %v1132 = vshrl.u32 %v1131, 7
  %v1133 = vsub.s32 1, %v1132
  %v1134 = vrot.slane %v1125, %v1133
  %v1153 = vunpack.c.l.b16 %v1109
  %v1154 = vunpack.c.h.b16 %v1109
  %v1155 = vunpack.c.l.b16 %v1110
  %v1156 = vunpack.c.h.b16 %v1110
  %v1157 = vunpack.c.l.b16 %v1111
  %v1158 = vunpack.c.h.b16 %v1111
  %v1159 = vunpack.c.l.b16 %v1112
  %v1160 = vunpack.c.h.b16 %v1112
  %v1161 = vunpack.c.l.b16 %v1113
  %v1162 = vunpack.c.h.b16 %v1113
  %v1163 = vunpack.c.l.b16 %v1114
  %v1164 = vunpack.c.h.b16 %v1114
  %v1165 = vunpack.c.l.b16 %v1115
  %v1166 = vunpack.c.h.b16 %v1115
  %v1167 = vunpack.c.l.b16 %v1116
  %v1168 = vunpack.c.h.b16 %v1116
  %v1169 = vunpack.c.l.b16 %v1117
  %v1170 = vunpack.c.h.b16 %v1117
  %v1171 = vunpack.c.l.b16 %v1118
  %v1172 = vunpack.c.h.b16 %v1118
  %v1173 = vunpack.c.l.b16 %v1119
  %v1174 = vunpack.c.h.b16 %v1119
  %v1175 = vunpack.c.l.b16 %v1120
  %v1176 = vunpack.c.h.b16 %v1120
  %v1177 = vunpack.c.l.b16 %v1121
  %v1178 = vunpack.c.h.b16 %v1121
  %v1179 = vunpack.c.l.b16 %v1122
  %v1180 = vunpack.c.h.b16 %v1122
  %v1181 = vunpack.c.l.b16 %v1123
  %v1182 = vunpack.c.h.b16 %v1123
  %v1183 = vunpack.c.l.b16 %v1124
  %v1184 = vunpack.c.h.b16 %v1124
  %v1185 = vpack.c.b16 %v1155, %v1153
  %v1186 = vpack.c.b16 %v1156, %v1154
  %v1187 = vpack.c.b16 %v1159, %v1157
  %v1188 = vpack.c.b16 %v1160, %v1158
  %v1189 = vpack.c.b16 %v1163, %v1161
  %v1190 = vpack.c.b16 %v1164, %v1162
  %v1191 = vpack.c.b16 %v1167, %v1165
  %v1192 = vpack.c.b16 %v1168, %v1166
  %v1193 = vpack.c.b16 %v1171, %v1169
  %v1194 = vpack.c.b16 %v1172, %v1170
  %v1195 = vpack.c.b16 %v1175, %v1173
  %v1196 = vpack.c.b16 %v1176, %v1174
  %v1197 = vpack.c.b16 %v1179, %v1177
  %v1198 = vpack.c.b16 %v1180, %v1178
  %v1199 = vpack.c.b16 %v1183, %v1181
  %v1200 = vpack.c.b16 %v1184, %v1182
  %1217 = vmatprep.subr.bf16.mxu0 %v1186
  %1218 = vmatpush1.bf16.msra.mxu0 %v1185
  %1219 = vmatprep.subr.bf16.mxu0 %v1188
  %1220 = vmatpush1.bf16.msra.mxu0 %v1187
  %1221 = vmatprep.subr.bf16.mxu0 %v1190
  %1222 = vmatpush1.bf16.msra.mxu0 %v1189
  %1223 = vmatprep.subr.bf16.mxu0 %v1192
  %1224 = vmatpush1.bf16.msra.mxu0 %v1191
  %1225 = vmatprep.subr.bf16.mxu0 %v1194
  %1226 = vmatpush1.bf16.msra.mxu0 %v1193
  %1227 = vmatprep.subr.bf16.mxu0 %v1196
  %1228 = vmatpush1.bf16.msra.mxu0 %v1195
  %1229 = vmatprep.subr.bf16.mxu0 %v1198
  %1230 = vmatpush1.bf16.msra.mxu0 %v1197
  %1231 = vmatprep.subr.bf16.mxu0 %v1200
  %1232 = vmatpush1.bf16.msra.mxu0 %v1199
  %1233 = vmatprep.subr.bf16.mxu0 0
  %1234 = vmatpush1.bf16.msra.mxu0 0
  %1235 = vmatprep.subr.bf16.mxu0 0
  %1236 = vmatpush1.bf16.msra.mxu0 0
  %1237 = vmatprep.subr.bf16.mxu0 0
  %1238 = vmatpush1.bf16.msra.mxu0 0
  %1239 = vmatprep.subr.bf16.mxu0 0
  %1240 = vmatpush1.bf16.msra.mxu0 0
  %1241 = vmatprep.subr.bf16.mxu0 0
  %1242 = vmatpush1.bf16.msra.mxu0 0
  %1243 = vmatprep.subr.bf16.mxu0 0
  %1244 = vmatpush1.bf16.msra.mxu0 0
  %1245 = vmatprep.subr.bf16.mxu0 0
  %1246 = vmatpush1.bf16.msra.mxu0 0
  %1247 = vmatprep.subr.bf16.mxu0 0
  %1248 = vmatpush1.bf16.msra.mxu0 0
  %1249 = vmatprep.mubr.bf16.mxu0 0
  %1250 = vmatmul.mubr.bf16.gmra.mrb[0].mxu0 %v1093
  %v1251 = vpop.f32.mrb[0].mxu0
  %v1252 = vadd.f32 %v1130, %v1251
  %v1253 = vpop.f32.mrb[0].mxu0
  %v1254 = vadd.f32 %v1134, %v1253
  %v1255 = vpop.f32.mrb[0].mxu0
  %v1256 = vadd.f32 %v1130, %v1255
  %v1257 = vpop.f32.mrb[0].mxu0
  %v1258 = vadd.f32 %v1134, %v1257
  %1259 = vmatprep.mubr.bf16.mxu0 0
  %1260 = vmatmul.mubr.bf16.gmra.mrb[0].mxu0 %v1094
  %v1261 = vpop.f32.mrb[0].mxu0
  %v1262 = vadd.f32 %v1130, %v1261
  %v1263 = vpop.f32.mrb[0].mxu0
  %v1264 = vadd.f32 %v1134, %v1263
  %v1265 = vpop.f32.mrb[0].mxu0
  %v1266 = vadd.f32 %v1130, %v1265
  %v1267 = vpop.f32.mrb[0].mxu0
  %v1268 = vadd.f32 %v1134, %v1267
  %1269 = vmatprep.mubr.bf16.mxu0 0
  %1270 = vmatmul.mubr.bf16.gmra.mrb[0].mxu0 %v1095
  %v1271 = vpop.f32.mrb[0].mxu0
  %v1272 = vadd.f32 %v1130, %v1271
  %v1273 = vpop.f32.mrb[0].mxu0
  %v1274 = vadd.f32 %v1134, %v1273
  %v1275 = vpop.f32.mrb[0].mxu0
  %v1276 = vadd.f32 %v1130, %v1275
  %v1277 = vpop.f32.mrb[0].mxu0
  %v1278 = vadd.f32 %v1134, %v1277
  %1279 = vmatprep.mubr.bf16.mxu0 0
  %1280 = vmatmul.mubr.bf16.gmra.mrb[0].mxu0 %v1096
  %v1281 = vpop.f32.mrb[0].mxu0
  %v1282 = vadd.f32 %v1130, %v1281
  %v1283 = vpop.f32.mrb[0].mxu0
  %v1284 = vadd.f32 %v1134, %v1283
  %v1285 = vpop.f32.mrb[0].mxu0
  %v1286 = vadd.f32 %v1130, %v1285
  %v1287 = vpop.f32.mrb[0].mxu0
  %v1288 = vadd.f32 %v1134, %v1287
  %1289 = vmatprep.mubr.bf16.mxu0 0
  %1290 = vmatmul.mubr.bf16.gmra.mrb[0].mxu0 %v1097
  %v1291 = vpop.f32.mrb[0].mxu0
  %v1292 = vadd.f32 %v1130, %v1291
  %v1293 = vpop.f32.mrb[0].mxu0
  %v1294 = vadd.f32 %v1134, %v1293
  %v1295 = vpop.f32.mrb[0].mxu0
  %v1296 = vadd.f32 %v1130, %v1295
  %v1297 = vpop.f32.mrb[0].mxu0
  %v1298 = vadd.f32 %v1134, %v1297
  %1299 = vmatprep.mubr.bf16.mxu0 0
  %1300 = vmatmul.mubr.bf16.gmra.mrb[0].mxu0 %v1098
  %v1301 = vpop.f32.mrb[0].mxu0
  %v1302 = vadd.f32 %v1130, %v1301
  %v1303 = vpop.f32.mrb[0].mxu0
  %v1304 = vadd.f32 %v1134, %v1303
  %v1305 = vpop.f32.mrb[0].mxu0
  %v1306 = vadd.f32 %v1130, %v1305
  %v1307 = vpop.f32.mrb[0].mxu0
  %v1308 = vadd.f32 %v1134, %v1307
  %1309 = vmatprep.mubr.bf16.mxu0 0
  %1310 = vmatmul.mubr.bf16.gmra.mrb[0].mxu0 %v1099
  %v1311 = vpop.f32.mrb[0].mxu0
  %v1312 = vadd.f32 %v1130, %v1311
  %v1313 = vpop.f32.mrb[0].mxu0
  %v1314 = vadd.f32 %v1134, %v1313
  %v1315 = vpop.f32.mrb[0].mxu0
  %v1316 = vadd.f32 %v1130, %v1315
  %v1317 = vpop.f32.mrb[0].mxu0
  %v1318 = vadd.f32 %v1134, %v1317
  %1319 = vmatprep.mubr.bf16.mxu0 0
  %1320 = vmatmul.mubr.bf16.gmra.mrb[0].mxu0 %v1100
  %v1321 = vpop.f32.mrb[0].mxu0
  %v1322 = vadd.f32 %v1130, %v1321
  %v1323 = vpop.f32.mrb[0].mxu0
  %v1324 = vadd.f32 %v1134, %v1323
  %v1325 = vpop.f32.mrb[0].mxu0
  %v1326 = vadd.f32 %v1130, %v1325
  %v1327 = vpop.f32.mrb[0].mxu0
  %v1328 = vadd.f32 %v1134, %v1327
  %1329 = vmatprep.mubr.bf16.mxu0 0
  %1330 = vmatmul.mubr.bf16.gmra.mrb[0].mxu0 %v1101
  %v1331 = vpop.f32.mrb[0].mxu0
  %v1332 = vadd.f32 %v1130, %v1331
  %v1333 = vpop.f32.mrb[0].mxu0
  %v1334 = vadd.f32 %v1134, %v1333
  %v1335 = vpop.f32.mrb[0].mxu0
  %v1336 = vadd.f32 %v1130, %v1335
  %v1337 = vpop.f32.mrb[0].mxu0
  %v1338 = vadd.f32 %v1134, %v1337
  %1339 = vmatprep.mubr.bf16.mxu0 0
  %1340 = vmatmul.mubr.bf16.gmra.mrb[0].mxu0 %v1102
  %v1341 = vpop.f32.mrb[0].mxu0
  %v1342 = vadd.f32 %v1130, %v1341
  %v1343 = vpop.f32.mrb[0].mxu0
  %v1344 = vadd.f32 %v1134, %v1343
  %v1345 = vpop.f32.mrb[0].mxu0
  %v1346 = vadd.f32 %v1130, %v1345
  %v1347 = vpop.f32.mrb[0].mxu0
  %v1348 = vadd.f32 %v1134, %v1347
  %1349 = vmatprep.mubr.bf16.mxu0 0
  %1350 = vmatmul.mubr.bf16.gmra.mrb[0].mxu0 %v1103
  %v1351 = vpop.f32.mrb[0].mxu0
  %v1352 = vadd.f32 %v1130, %v1351
  %v1353 = vpop.f32.mrb[0].mxu0
  %v1354 = vadd.f32 %v1134, %v1353
  %v1355 = vpop.f32.mrb[0].mxu0
  %v1356 = vadd.f32 %v1130, %v1355
  %v1357 = vpop.f32.mrb[0].mxu0
  %v1358 = vadd.f32 %v1134, %v1357
  %1359 = vmatprep.mubr.bf16.mxu0 0
  %1360 = vmatmul.mubr.bf16.gmra.mrb[0].mxu0 %v1104
  %v1361 = vpop.f32.mrb[0].mxu0
  %v1362 = vadd.f32 %v1130, %v1361
  %v1363 = vpop.f32.mrb[0].mxu0
  %v1364 = vadd.f32 %v1134, %v1363
  %v1365 = vpop.f32.mrb[0].mxu0
  %v1366 = vadd.f32 %v1130, %v1365
  %v1367 = vpop.f32.mrb[0].mxu0
  %v1368 = vadd.f32 %v1134, %v1367
  %1369 = vmatprep.mubr.bf16.mxu0 0
  %1370 = vmatmul.mubr.bf16.gmra.mrb[0].mxu0 %v1105
  %v1371 = vpop.f32.mrb[0].mxu0
  %v1372 = vadd.f32 %v1130, %v1371
  %v1373 = vpop.f32.mrb[0].mxu0
  %v1374 = vadd.f32 %v1134, %v1373
  %v1375 = vpop.f32.mrb[0].mxu0
  %v1376 = vadd.f32 %v1130, %v1375
  %v1377 = vpop.f32.mrb[0].mxu0
  %v1378 = vadd.f32 %v1134, %v1377
  %1379 = vmatprep.mubr.bf16.mxu0 0
  %1380 = vmatmul.mubr.bf16.gmra.mrb[0].mxu0 %v1106
  %v1381 = vpop.f32.mrb[0].mxu0
  %v1382 = vadd.f32 %v1130, %v1381
  %v1383 = vpop.f32.mrb[0].mxu0
  %v1384 = vadd.f32 %v1134, %v1383
  %v1385 = vpop.f32.mrb[0].mxu0
  %v1386 = vadd.f32 %v1130, %v1385
  %v1387 = vpop.f32.mrb[0].mxu0
  %v1388 = vadd.f32 %v1134, %v1387
  %1389 = vmatprep.mubr.bf16.mxu0 0
  %1390 = vmatmul.mubr.bf16.gmra.mrb[0].mxu0 %v1107
  %v1391 = vpop.f32.mrb[0].mxu0
  %v1392 = vadd.f32 %v1130, %v1391
  %v1393 = vpop.f32.mrb[0].mxu0
  %v1394 = vadd.f32 %v1134, %v1393
  %v1395 = vpop.f32.mrb[0].mxu0
  %v1396 = vadd.f32 %v1130, %v1395
  %v1397 = vpop.f32.mrb[0].mxu0
  %v1398 = vadd.f32 %v1134, %v1397
  %1399 = vmatprep.mubr.bf16.mxu0 0
  %1400 = vmatmul.mubr.bf16.gmra.mrb[0].mxu0 %v1108
  %v1401 = vpop.f32.mrb[0].mxu0
  %v1402 = vadd.f32 %v1130, %v1401
  %v1403 = vpop.f32.mrb[0].mxu0
  %v1404 = vadd.f32 %v1134, %v1403
  %v1405 = vpop.f32.mrb[0].mxu0
  %v1406 = vadd.f32 %v1130, %v1405
  %v1407 = vpop.f32.mrb[0].mxu0
  %v1408 = vadd.f32 %v1134, %v1407
  %1409 = vdwg.mxu0
  %v1410 = vmax.f32 %v1252, 0.0
  %v1411 = vmax.f32 %v1254, 0.0
  %v1412 = vmax.f32 %v1256, 0.0
  %v1413 = vmax.f32 %v1258, 0.0
  %v1414 = vmax.f32 %v1262, 0.0
  %v1415 = vmax.f32 %v1264, 0.0
  %v1416 = vmax.f32 %v1266, 0.0
  %v1417 = vmax.f32 %v1268, 0.0
  %v1418 = vmax.f32 %v1272, 0.0
  %v1419 = vmax.f32 %v1274, 0.0
  %v1420 = vmax.f32 %v1276, 0.0
  %v1421 = vmax.f32 %v1278, 0.0
  %v1422 = vmax.f32 %v1282, 0.0
  %v1423 = vmax.f32 %v1284, 0.0
  %v1424 = vmax.f32 %v1286, 0.0
  %v1425 = vmax.f32 %v1288, 0.0
  %v1426 = vmax.f32 %v1292, 0.0
  %v1427 = vmax.f32 %v1294, 0.0
  %v1428 = vmax.f32 %v1296, 0.0
  %v1429 = vmax.f32 %v1298, 0.0
  %v1430 = vmax.f32 %v1302, 0.0
  %v1431 = vmax.f32 %v1304, 0.0
  %v1432 = vmax.f32 %v1306, 0.0
  %v1433 = vmax.f32 %v1308, 0.0
  %v1434 = vmax.f32 %v1312, 0.0
  %v1435 = vmax.f32 %v1314, 0.0
  %v1436 = vmax.f32 %v1316, 0.0
  %v1437 = vmax.f32 %v1318, 0.0
  %v1438 = vmax.f32 %v1322, 0.0
  %v1439 = vmax.f32 %v1324, 0.0
  %v1440 = vmax.f32 %v1326, 0.0
  %v1441 = vmax.f32 %v1328, 0.0
  %v1442 = vmax.f32 %v1332, 0.0
  %v1443 = vmax.f32 %v1334, 0.0
  %v1444 = vmax.f32 %v1336, 0.0
  %v1445 = vmax.f32 %v1338, 0.0
  %v1446 = vmax.f32 %v1342, 0.0
  %v1447 = vmax.f32 %v1344, 0.0
  %v1448 = vmax.f32 %v1346, 0.0
  %v1449 = vmax.f32 %v1348, 0.0
  %v1450 = vmax.f32 %v1352, 0.0
  %v1451 = vmax.f32 %v1354, 0.0
  %v1452 = vmax.f32 %v1356, 0.0
  %v1453 = vmax.f32 %v1358, 0.0
  %v1454 = vmax.f32 %v1362, 0.0
  %v1455 = vmax.f32 %v1364, 0.0
  %v1456 = vmax.f32 %v1366, 0.0
  %v1457 = vmax.f32 %v1368, 0.0
  %v1458 = vmax.f32 %v1372, 0.0
  %v1459 = vmax.f32 %v1374, 0.0
  %v1460 = vmax.f32 %v1376, 0.0
  %v1461 = vmax.f32 %v1378, 0.0
  %v1462 = vmax.f32 %v1382, 0.0
  %v1463 = vmax.f32 %v1384, 0.0
  %v1464 = vmax.f32 %v1386, 0.0
  %v1465 = vmax.f32 %v1388, 0.0
  %v1466 = vmax.f32 %v1392, 0.0
  %v1467 = vmax.f32 %v1394, 0.0
  %v1468 = vmax.f32 %v1396, 0.0
  %v1469 = vmax.f32 %v1398, 0.0
  %v1470 = vmax.f32 %v1402, 0.0
  %v1471 = vmax.f32 %v1404, 0.0
  %v1472 = vmax.f32 %v1406, 0.0
  %v1473 = vmax.f32 %v1408, 0.0
  %v1474 = vpack.c.bf16 %v1412, %v1410
  %v1475 = vpack.c.bf16 %v1413, %v1411
  %v1476 = vpack.c.bf16 %v1416, %v1414
  %v1477 = vpack.c.bf16 %v1417, %v1415
  %v1478 = vpack.c.bf16 %v1420, %v1418
  %v1479 = vpack.c.bf16 %v1421, %v1419
  %v1480 = vpack.c.bf16 %v1424, %v1422
  %v1481 = vpack.c.bf16 %v1425, %v1423
  %v1482 = vpack.c.bf16 %v1428, %v1426
  %v1483 = vpack.c.bf16 %v1429, %v1427
  %v1484 = vpack.c.bf16 %v1432, %v1430
  %v1485 = vpack.c.bf16 %v1433, %v1431
  %v1486 = vpack.c.bf16 %v1436, %v1434
  %v1487 = vpack.c.bf16 %v1437, %v1435
  %v1488 = vpack.c.bf16 %v1440, %v1438
  %v1489 = vpack.c.bf16 %v1441, %v1439
  %v1490 = vpack.c.bf16 %v1444, %v1442
  %v1491 = vpack.c.bf16 %v1445, %v1443
  %v1492 = vpack.c.bf16 %v1448, %v1446
  %v1493 = vpack.c.bf16 %v1449, %v1447
  %v1494 = vpack.c.bf16 %v1452, %v1450
  %v1495 = vpack.c.bf16 %v1453, %v1451
  %v1496 = vpack.c.bf16 %v1456, %v1454
  %v1497 = vpack.c.bf16 %v1457, %v1455
  %v1498 = vpack.c.bf16 %v1460, %v1458
  %v1499 = vpack.c.bf16 %v1461, %v1459
  %v1500 = vpack.c.bf16 %v1464, %v1462
  %v1501 = vpack.c.bf16 %v1465, %v1463
  %v1502 = vpack.c.bf16 %v1468, %v1466
  %v1503 = vpack.c.bf16 %v1469, %v1467
  %v1504 = vpack.c.bf16 %v1472, %v1470
  %v1505 = vpack.c.bf16 %v1473, %v1471
  %v1506 = vld [vmem:[%s9] sm:$0xf]
  %v1507 = vld [vmem:[%s9 + $0x4] sm:$0xf]
  %v1508 = vld [vmem:[%s9 + $0x8] sm:$0xf]
  %v1509 = vld [vmem:[%s9 + $0xc] sm:$0xf]
  %v1510 = vld [vmem:[%s9 + $0x10] sm:$0xf]
  %v1511 = vld [vmem:[%s9 + $0x14] sm:$0xf]
  %v1512 = vld [vmem:[%s9 + $0x18] sm:$0xf]
  %v1513 = vld [vmem:[%s9 + $0x1c] sm:$0xf]
  %v1514 = vld [vmem:[%s9 + $0x20] sm:$0xf]
  %v1515 = vld [vmem:[%s9 + $0x24] sm:$0xf]
  %v1516 = vld [vmem:[%s9 + $0x28] sm:$0xf]
  %v1517 = vld [vmem:[%s9 + $0x2c] sm:$0xf]
  %v1518 = vld [vmem:[%s9 + $0x30] sm:$0xf]
  %v1519 = vld [vmem:[%s9 + $0x34] sm:$0xf]
  %v1520 = vld [vmem:[%s9 + $0x38] sm:$0xf]
  %v1521 = vld [vmem:[%s9 + $0x3c] sm:$0xf]
  %v1522 = vld [vmem:[%s9 + $0x40] sm:$0xf]
  %v1523 = vld [vmem:[%s9 + $0x44] sm:$0xf]
  %v1524 = vld [vmem:[%s9 + $0x48] sm:$0xf]
  %v1525 = vld [vmem:[%s9 + $0x4c] sm:$0xf]
  %v1526 = vld [vmem:[%s9 + $0x50] sm:$0xf]
  %v1527 = vld [vmem:[%s9 + $0x54] sm:$0xf]
  %v1528 = vld [vmem:[%s9 + $0x58] sm:$0xf]
  %v1529 = vld [vmem:[%s9 + $0x5c] sm:$0xf]
  %v1530 = vld [vmem:[%s9 + $0x60] sm:$0xf]
  %v1531 = vld [vmem:[%s9 + $0x64] sm:$0xf]
  %v1532 = vld [vmem:[%s9 + $0x68] sm:$0xf]
  %v1533 = vld [vmem:[%s9 + $0x6c] sm:$0xf]
  %v1534 = vld [vmem:[%s9 + $0x70] sm:$0xf]
  %v1535 = vld [vmem:[%s9 + $0x74] sm:$0xf]
  %v1536 = vld [vmem:[%s9 + $0x78] sm:$0xf]
  %v1537 = vld [vmem:[%s9 + $0x7c] sm:$0xf]
  %v1538 = vld [vmem:[%s10] sm:$0x1]
  %v1540 = vlaneseq
  %v1541 = vshrl.u32 %v1540, 7
  %v1542 = vsub.s32 0, %v1541
  %v1543 = vrot.slane %v1538, %v1542
  %v1577 = vunpack.c.l.b16 %v1506
  %v1578 = vunpack.c.l.b16 %v1507
  %v1579 = vunpack.c.l.b16 %v1508
  %v1580 = vunpack.c.l.b16 %v1509
  %v1581 = vunpack.c.l.b16 %v1510
  %v1582 = vunpack.c.l.b16 %v1511
  %v1583 = vunpack.c.l.b16 %v1512
  %v1584 = vunpack.c.l.b16 %v1513
  %v1585 = vunpack.c.l.b16 %v1514
  %v1586 = vunpack.c.l.b16 %v1515
  %v1587 = vunpack.c.l.b16 %v1516
  %v1588 = vunpack.c.l.b16 %v1517
  %v1589 = vunpack.c.l.b16 %v1518
  %v1590 = vunpack.c.l.b16 %v1519
  %v1591 = vunpack.c.l.b16 %v1520
  %v1592 = vunpack.c.l.b16 %v1521
  %v1593 = vunpack.c.l.b16 %v1522
  %v1594 = vunpack.c.l.b16 %v1523
  %v1595 = vunpack.c.l.b16 %v1524
  %v1596 = vunpack.c.l.b16 %v1525
  %v1597 = vunpack.c.l.b16 %v1526
  %v1598 = vunpack.c.l.b16 %v1527
  %v1599 = vunpack.c.l.b16 %v1528
  %v1600 = vunpack.c.l.b16 %v1529
  %v1601 = vunpack.c.l.b16 %v1530
  %v1602 = vunpack.c.l.b16 %v1531
  %v1603 = vunpack.c.l.b16 %v1532
  %v1604 = vunpack.c.l.b16 %v1533
  %v1605 = vunpack.c.l.b16 %v1534
  %v1606 = vunpack.c.l.b16 %v1535
  %v1607 = vunpack.c.l.b16 %v1536
  %v1608 = vunpack.c.l.b16 %v1537
  %v1609 = vpack.c.b16 %v1578, %v1577
  %v1610 = vpack.c.b16 %v1580, %v1579
  %v1611 = vpack.c.b16 %v1582, %v1581
  %v1612 = vpack.c.b16 %v1584, %v1583
  %v1613 = vpack.c.b16 %v1586, %v1585
  %v1614 = vpack.c.b16 %v1588, %v1587
  %v1615 = vpack.c.b16 %v1590, %v1589
  %v1616 = vpack.c.b16 %v1592, %v1591
  %v1617 = vpack.c.b16 %v1594, %v1593
  %v1618 = vpack.c.b16 %v1596, %v1595
  %v1619 = vpack.c.b16 %v1598, %v1597
  %v1620 = vpack.c.b16 %v1600, %v1599
  %v1621 = vpack.c.b16 %v1602, %v1601
  %v1622 = vpack.c.b16 %v1604, %v1603
  %v1623 = vpack.c.b16 %v1606, %v1605
  %v1624 = vpack.c.b16 %v1608, %v1607
  %1641 = vmatprep.subr.bf16.mxu0 0
  %1642 = vmatpush1.bf16.msra.mxu0 %v1609
  %1643 = vmatprep.subr.bf16.mxu0 0
  %1644 = vmatpush1.bf16.msra.mxu0 %v1610
  %1645 = vmatprep.subr.bf16.mxu0 0
  %1646 = vmatpush1.bf16.msra.mxu0 %v1611
  %1647 = vmatprep.subr.bf16.mxu0 0
  %1648 = vmatpush1.bf16.msra.mxu0 %v1612
  %1649 = vmatprep.subr.bf16.mxu0 0
  %1650 = vmatpush1.bf16.msra.mxu0 %v1613
  %1651 = vmatprep.subr.bf16.mxu0 0
  %1652 = vmatpush1.bf16.msra.mxu0 %v1614
  %1653 = vmatprep.subr.bf16.mxu0 0
  %1654 = vmatpush1.bf16.msra.mxu0 %v1615
  %1655 = vmatprep.subr.bf16.mxu0 0
  %1656 = vmatpush1.bf16.msra.mxu0 %v1616
  %1657 = vmatprep.subr.bf16.mxu0 0
  %1658 = vmatpush1.bf16.msra.mxu0 %v1617
  %1659 = vmatprep.subr.bf16.mxu0 0
  %1660 = vmatpush1.bf16.msra.mxu0 %v1618
  %1661 = vmatprep.subr.bf16.mxu0 0
  %1662 = vmatpush1.bf16.msra.mxu0 %v1619
  %1663 = vmatprep.subr.bf16.mxu0 0
  %1664 = vmatpush1.bf16.msra.mxu0 %v1620
  %1665 = vmatprep.subr.bf16.mxu0 0
  %1666 = vmatpush1.bf16.msra.mxu0 %v1621
  %1667 = vmatprep.subr.bf16.mxu0 0
  %1668 = vmatpush1.bf16.msra.mxu0 %v1622
  %1669 = vmatprep.subr.bf16.mxu0 0
  %1670 = vmatpush1.bf16.msra.mxu0 %v1623
  %1671 = vmatprep.subr.bf16.mxu0 0
  %1672 = vmatpush1.bf16.msra.mxu0 %v1624
  %1673 = vmatprep.mubr.bf16.mxu0 %v1475
  %1674 = vmatmul.mubr.bf16.gmra.mrb[0].mxu0 %v1474
  %v1675 = vpop.f32.mrb[0].mxu0
  %v1676 = vadd.f32 %v1543, %v1675
  %v1677 = vpop.f32.mrb[0].mxu0
  %v1678 = vpop.f32.mrb[0].mxu0
  %v1679 = vadd.f32 %v1543, %v1678
  %v1680 = vpop.f32.mrb[0].mxu0
  %1681 = vmatprep.mubr.bf16.mxu0 %v1477
  %1682 = vmatmul.mubr.bf16.gmra.mrb[0].mxu0 %v1476
  %v1683 = vpop.f32.mrb[0].mxu0
  %v1684 = vadd.f32 %v1543, %v1683
  %v1685 = vpop.f32.mrb[0].mxu0
  %v1686 = vpop.f32.mrb[0].mxu0
  %v1687 = vadd.f32 %v1543, %v1686
  %v1688 = vpop.f32.mrb[0].mxu0
  %1689 = vmatprep.mubr.bf16.mxu0 %v1479
  %1690 = vmatmul.mubr.bf16.gmra.mrb[0].mxu0 %v1478
  %v1691 = vpop.f32.mrb[0].mxu0
  %v1692 = vadd.f32 %v1543, %v1691
  %v1693 = vpop.f32.mrb[0].mxu0
  %v1694 = vpop.f32.mrb[0].mxu0
  %v1695 = vadd.f32 %v1543, %v1694
  %v1696 = vpop.f32.mrb[0].mxu0
  %1697 = vmatprep.mubr.bf16.mxu0 %v1481
  %1698 = vmatmul.mubr.bf16.gmra.mrb[0].mxu0 %v1480
  %v1699 = vpop.f32.mrb[0].mxu0
  %v1700 = vadd.f32 %v1543, %v1699
  %v1701 = vpop.f32.mrb[0].mxu0
  %v1702 = vpop.f32.mrb[0].mxu0
  %v1703 = vadd.f32 %v1543, %v1702
  %v1704 = vpop.f32.mrb[0].mxu0
  %1705 = vmatprep.mubr.bf16.mxu0 %v1483
  %1706 = vmatmul.mubr.bf16.gmra.mrb[0].mxu0 %v1482
  %v1707 = vpop.f32.mrb[0].mxu0
  %v1708 = vadd.f32 %v1543, %v1707
  %v1709 = vpop.f32.mrb[0].mxu0
  %v1710 = vpop.f32.mrb[0].mxu0
  %v1711 = vadd.f32 %v1543, %v1710
  %v1712 = vpop.f32.mrb[0].mxu0
  %1713 = vmatprep.mubr.bf16.mxu0 %v1485
  %1714 = vmatmul.mubr.bf16.gmra.mrb[0].mxu0 %v1484
  %v1715 = vpop.f32.mrb[0].mxu0
  %v1716 = vadd.f32 %v1543, %v1715
  %v1717 = vpop.f32.mrb[0].mxu0
  %v1718 = vpop.f32.mrb[0].mxu0
  %v1719 = vadd.f32 %v1543, %v1718
  %v1720 = vpop.f32.mrb[0].mxu0
  %1721 = vmatprep.mubr.bf16.mxu0 %v1487
  %1722 = vmatmul.mubr.bf16.gmra.mrb[0].mxu0 %v1486
  %v1723 = vpop.f32.mrb[0].mxu0
  %v1724 = vadd.f32 %v1543, %v1723
  %v1725 = vpop.f32.mrb[0].mxu0
  %v1726 = vpop.f32.mrb[0].mxu0
  %v1727 = vadd.f32 %v1543, %v1726
  %v1728 = vpop.f32.mrb[0].mxu0
  %1729 = vmatprep.mubr.bf16.mxu0 %v1489
  %1730 = vmatmul.mubr.bf16.gmra.mrb[0].mxu0 %v1488
  %v1731 = vpop.f32.mrb[0].mxu0
  %v1732 = vadd.f32 %v1543, %v1731
  %v1733 = vpop.f32.mrb[0].mxu0
  %v1734 = vpop.f32.mrb[0].mxu0
  %v1735 = vadd.f32 %v1543, %v1734
  %v1736 = vpop.f32.mrb[0].mxu0
  %1737 = vmatprep.mubr.bf16.mxu0 %v1491
  %1738 = vmatmul.mubr.bf16.gmra.mrb[0].mxu0 %v1490
  %v1739 = vpop.f32.mrb[0].mxu0
  %v1740 = vadd.f32 %v1543, %v1739
  %v1741 = vpop.f32.mrb[0].mxu0
  %v1742 = vpop.f32.mrb[0].mxu0
  %v1743 = vadd.f32 %v1543, %v1742
  %v1744 = vpop.f32.mrb[0].mxu0
  %1745 = vmatprep.mubr.bf16.mxu0 %v1493
  %1746 = vmatmul.mubr.bf16.gmra.mrb[0].mxu0 %v1492
  %v1747 = vpop.f32.mrb[0].mxu0
  %v1748 = vadd.f32 %v1543, %v1747
  %v1749 = vpop.f32.mrb[0].mxu0
  %v1750 = vpop.f32.mrb[0].mxu0
  %v1751 = vadd.f32 %v1543, %v1750
  %v1752 = vpop.f32.mrb[0].mxu0
  %1753 = vmatprep.mubr.bf16.mxu0 %v1495
  %1754 = vmatmul.mubr.bf16.gmra.mrb[0].mxu0 %v1494
  %v1755 = vpop.f32.mrb[0].mxu0
  %v1756 = vadd.f32 %v1543, %v1755
  %v1757 = vpop.f32.mrb[0].mxu0
  %v1758 = vpop.f32.mrb[0].mxu0
  %v1759 = vadd.f32 %v1543, %v1758
  %v1760 = vpop.f32.mrb[0].mxu0
  %1761 = vmatprep.mubr.bf16.mxu0 %v1497
  %1762 = vmatmul.mubr.bf16.gmra.mrb[0].mxu0 %v1496
  %v1763 = vpop.f32.mrb[0].mxu0
  %v1764 = vadd.f32 %v1543, %v1763
  %v1765 = vpop.f32.mrb[0].mxu0
  %v1766 = vpop.f32.mrb[0].mxu0
  %v1767 = vadd.f32 %v1543, %v1766
  %v1768 = vpop.f32.mrb[0].mxu0
  %1769 = vmatprep.mubr.bf16.mxu0 %v1499
  %1770 = vmatmul.mubr.bf16.gmra.mrb[0].mxu0 %v1498
  %v1771 = vpop.f32.mrb[0].mxu0
  %v1772 = vadd.f32 %v1543, %v1771
  %v1773 = vpop.f32.mrb[0].mxu0
  %v1774 = vpop.f32.mrb[0].mxu0
  %v1775 = vadd.f32 %v1543, %v1774
  %v1776 = vpop.f32.mrb[0].mxu0
  %1777 = vmatprep.mubr.bf16.mxu0 %v1501
  %1778 = vmatmul.mubr.bf16.gmra.mrb[0].mxu0 %v1500
  %v1779 = vpop.f32.mrb[0].mxu0
  %v1780 = vadd.f32 %v1543, %v1779
  %v1781 = vpop.f32.mrb[0].mxu0
  %v1782 = vpop.f32.mrb[0].mxu0
  %v1783 = vadd.f32 %v1543, %v1782
  %v1784 = vpop.f32.mrb[0].mxu0
  %1785 = vmatprep.mubr.bf16.mxu0 %v1503
  %1786 = vmatmul.mubr.bf16.gmra.mrb[0].mxu0 %v1502
  %v1787 = vpop.f32.mrb[0].mxu0
  %v1788 = vadd.f32 %v1543, %v1787
  %v1789 = vpop.f32.mrb[0].mxu0
  %v1790 = vpop.f32.mrb[0].mxu0
  %v1791 = vadd.f32 %v1543, %v1790
  %v1792 = vpop.f32.mrb[0].mxu0
  %1793 = vmatprep.mubr.bf16.mxu0 %v1505
  %1794 = vmatmul.mubr.bf16.gmra.mrb[0].mxu0 %v1504
  %v1795 = vpop.f32.mrb[0].mxu0
  %v1796 = vadd.f32 %v1543, %v1795
  %v1797 = vpop.f32.mrb[0].mxu0
  %v1798 = vpop.f32.mrb[0].mxu0
  %v1799 = vadd.f32 %v1543, %v1798
  %v1800 = vpop.f32.mrb[0].mxu0
  %1801 = vdwg.mxu0
  %1802 = vst.msk [vmem:[%s11] sm:$0xff] %vm147, %v1676
  %1803 = vst.msk [vmem:[%s11 + $0x8] sm:$0xff] %vm147, %v1679
  %1804 = vst.msk [vmem:[%s11 + $0x10] sm:$0xff] %vm147, %v1684
  %1805 = vst.msk [vmem:[%s11 + $0x18] sm:$0xff] %vm147, %v1687
  %1806 = vst.msk [vmem:[%s11 + $0x20] sm:$0xff] %vm147, %v1692
  %1807 = vst.msk [vmem:[%s11 + $0x28] sm:$0xff] %vm147, %v1695
  %1808 = vst.msk [vmem:[%s11 + $0x30] sm:$0xff] %vm147, %v1700
  %1809 = vst.msk [vmem:[%s11 + $0x38] sm:$0xff] %vm147, %v1703
  %1810 = vst.msk [vmem:[%s11 + $0x40] sm:$0xff] %vm147, %v1708
  %1811 = vst.msk [vmem:[%s11 + $0x48] sm:$0xff] %vm147, %v1711
  %1812 = vst.msk [vmem:[%s11 + $0x50] sm:$0xff] %vm147, %v1716
  %1813 = vst.msk [vmem:[%s11 + $0x58] sm:$0xff] %vm147, %v1719
  %1814 = vst.msk [vmem:[%s11 + $0x60] sm:$0xff] %vm147, %v1724
  %1815 = vst.msk [vmem:[%s11 + $0x68] sm:$0xff] %vm147, %v1727
  %1816 = vst.msk [vmem:[%s11 + $0x70] sm:$0xff] %vm147, %v1732
  %1817 = vst.msk [vmem:[%s11 + $0x78] sm:$0xff] %vm147, %v1735
  %1818 = vst.msk [vmem:[%s11 + $0x80] sm:$0xff] %vm147, %v1740
  %1819 = vst.msk [vmem:[%s11 + $0x88] sm:$0xff] %vm147, %v1743
  %1820 = vst.msk [vmem:[%s11 + $0x90] sm:$0xff] %vm147, %v1748
  %1821 = vst.msk [vmem:[%s11 + $0x98] sm:$0xff] %vm147, %v1751
  %1822 = vst.msk [vmem:[%s11 + $0xa0] sm:$0xff] %vm147, %v1756
  %1823 = vst.msk [vmem:[%s11 + $0xa8] sm:$0xff] %vm147, %v1759
  %1824 = vst.msk [vmem:[%s11 + $0xb0] sm:$0xff] %vm147, %v1764
  %1825 = vst.msk [vmem:[%s11 + $0xb8] sm:$0xff] %vm147, %v1767
  %1826 = vst.msk [vmem:[%s11 + $0xc0] sm:$0xff] %vm147, %v1772
  %1827 = vst.msk [vmem:[%s11 + $0xc8] sm:$0xff] %vm147, %v1775
  %1828 = vst.msk [vmem:[%s11 + $0xd0] sm:$0xff] %vm147, %v1780
  %1829 = vst.msk [vmem:[%s11 + $0xd8] sm:$0xff] %vm147, %v1783
  %1830 = vst.msk [vmem:[%s11 + $0xe0] sm:$0xff] %vm147, %v1788
  %1831 = vst.msk [vmem:[%s11 + $0xe8] sm:$0xff] %vm147, %v1791
  %1832 = vst.msk [vmem:[%s11 + $0xf0] sm:$0xff] %vm147, %v1796
  %1833 = vst.msk [vmem:[%s11 + $0xf8] sm:$0xff] %vm147, %v1799
  // Predicated region
  $region46: #{tpu_custom_call.1} parent=0 // pred_check
    _
  $region47: #{tpu_custom_call.1} parent=0 // pred_check_branch
    %1835 = sbr.rel (0) target = $region49
  $region48: #{tpu_custom_call.1} parent=0 // pred_region
    _
  $region49: #{tpu_custom_call.1} parent=0 // pred_fallthru
    _
  // Predicated region
  $region50: #{tpu_custom_call.1} parent=0 // pred_check
    _
  $region51: #{tpu_custom_call.1} parent=0 // pred_check_branch
    %1837 = sbr.rel (0) target = $region53
  $region52: #{tpu_custom_call.1} parent=0 // pred_region
    _
  $region53: #{tpu_custom_call.1} parent=0 // pred_fallthru
    _

</llo_original>
